<compile_context>
chip_gen: v7x
topology: tpu7x:2x2x1
jax: 0.10.0
libtpu: 0.0.40
codegen_flags: <defaults>
</compile_context>

<pallas_src>
import jax
import jax.numpy as jnp
from jax import lax
from jax.experimental import pallas as pl
from jax.experimental.pallas import tpu as pltpu


def effnetv2_l_meta_head_kernel(
    feat_ref,   # (B, 1280) f32   backbone features
    meta_ref,   # (B, 2)    f32   raw metadata
    wm_ref,     # (2, 4)    f32   meta Linear weight, pre-transposed (in, out)
    bm_ref,     # (1, 4)    f32   meta Linear bias
    bnm_ref,    # (4, 4)    f32   meta BN rows: gamma, beta, running_mean, running_var
    w1a_ref,    # (1280, 512) bf16  classifier L1 weight (image part), (in, out)
    w1b_ref,    # (4, 512)  f32   classifier L1 weight (meta part), (in, out)
    b1_ref,     # (1, 512)  f32
    bn1_ref,    # (4, 512)  f32   classifier BN rows: gamma, beta, mean, var
    w2_ref,     # (512, 7)  bf16  classifier L2 weight, (in, out)
    b2_ref,     # (1, 7)    f32
    o_ref,      # (B, 7)    f32
):
    f32 = jnp.float32
    eps = 1e-5

    def bn_eval(x, bn_ref):
        # rows: gamma, beta, running_mean, running_var  (eval-mode BatchNorm1d)
        gamma = bn_ref[0:1, :]
        beta = bn_ref[1:2, :]
        mean = bn_ref[2:3, :]
        var = bn_ref[3:4, :]
        scale = gamma * lax.rsqrt(var + eps)          # EUP rsqrt
        return x * scale + (beta - mean * scale)

    def silu(x):
        # x * sigmoid(x); the divide goes to the EUP via approx reciprocal.
        return x * pl.reciprocal(1.0 + jnp.exp(-x), approx=True)

    # ---- meta branch: Linear(2 -> 4) + BN(eval) + SiLU -------------------------------
    # Contraction depth is 2 -> do it as rank-1 VPU updates instead of a sub-tile matmul.
    meta = meta_ref[...]                              # (B, 2)
    wm = wm_ref[...]                                  # (2, 4)
    ym = bm_ref[...]
    for i in range(meta.shape[1]):
        ym = ym + meta[:, i:i + 1] * wm[i:i + 1, :]
    ym = silu(bn_eval(ym, bnm_ref))                   # (B, 4)

    # ---- concat + Linear(1284 -> 512), concat eliminated by splitting the weight -----
    # Image part: bf16 MXU matmul with f32 accumulation.
    h = jnp.dot(feat_ref[...].astype(jnp.bfloat16), w1a_ref[...],
                preferred_element_type=f32)           # (B, 512)
    h = h + b1_ref[...]
    # Meta part: 4 exact-f32 rank-1 VPU updates (K=4 is too shallow for the MXU).
    for i in range(w1b_ref.shape[0]):
        h = h + ym[:, i:i + 1] * w1b_ref[i:i + 1, :]
    h = silu(bn_eval(h, bn1_ref))
    # nn.Dropout(p=0.4) is identity in eval mode (deterministic forward).

    # ---- Linear(512 -> out_features): bf16 MXU, f32 accumulation ----------------------
    out = jnp.dot(h.astype(jnp.bfloat16), w2_ref[...], preferred_element_type=f32)
    o_ref[...] = out + b2_ref[...]


def effnetv2_l_meta_head(features, meta, params):
    """Pallas forward of EffnetV2_L_meta after the backbone: meta MLP + concat + classifier."""
    B, c_feat = features.shape
    h1, c_in1 = params["w1"].shape                    # (512, 1284)
    c_out = params["w2"].shape[0]                     # 7
    c_meta = params["wm"].shape[0]                    # 4
    assert c_in1 == c_feat + c_meta

    # Pre-transpose torch-layout (out, in) weights to (in, out) so every in-kernel
    # contraction is lhs-last x rhs-first (no XLU transposes), and split the first
    # classifier weight so concat([features, meta]) never materializes.
    w1 = jnp.asarray(params["w1"], jnp.float32)
    wm = jnp.asarray(params["wm"], jnp.float32).T                      # (2, 4)
    w1a = w1[:, :c_feat].T.astype(jnp.bfloat16)                        # (1280, 512) bf16
    w1b = w1[:, c_feat:].T.astype(jnp.float32)                         # (4, 512)
    w2 = jnp.asarray(params["w2"], jnp.float32).T.astype(jnp.bfloat16) # (512, 7) bf16

    bm = jnp.asarray(params["bm"], jnp.float32).reshape(1, c_meta)
    b1 = jnp.asarray(params["b1"], jnp.float32).reshape(1, h1)
    b2 = jnp.asarray(params["b2"], jnp.float32).reshape(1, c_out)
    bnm = jnp.stack(params["bn_m"]).astype(jnp.float32)                # (4, 4)
    bn1 = jnp.stack(params["bn_1"]).astype(jnp.float32)                # (4, 512)

    vmem = lambda: pl.BlockSpec(memory_space=pltpu.MemorySpace.VMEM)
    return pl.pallas_call(
        effnetv2_l_meta_head_kernel,
        out_shape=jax.ShapeDtypeStruct((B, c_out), jnp.float32),
        in_specs=[vmem() for _ in range(11)],
        out_specs=vmem(),
    )(features.astype(jnp.float32), meta.astype(jnp.float32),
      wm, bm, bnm, w1a, w1b, b1, bn1, w2, b2)


def effnetv2_l_meta_head_ref(features, meta, params, eps=1e-5):
    """Pure-JAX f32 reference mirroring the PyTorch eval-mode forward exactly."""
    def bn(x, stats):
        gamma, beta, mean, var = stats
        return (x - mean) * gamma / jnp.sqrt(var + eps) + beta

    def silu(x):
        return x * jax.nn.sigmoid(x)

    ym = silu(bn(meta @ params["wm"].T + params["bm"], params["bn_m"]))
    f = jnp.concatenate([features, ym], axis=1)
    h = silu(bn(f @ params["w1"].T + params["b1"], params["bn_1"]))
    # Dropout is identity in eval mode.
    return h @ params["w2"].T + params["b2"]


if __name__ == "__main__":
    B, C_FEAT, C_META_IN, C_META, H1, C_OUT = 2, 1280, 2, 4, 512, 7

    key = jax.random.PRNGKey(0)
    ks = jax.random.split(key, 8)

    # Backbone output (stand-in for self.model(img), see TODO above) and raw metadata.
    features = jax.random.normal(ks[0], (B, C_FEAT), jnp.float32)
    meta = jax.random.normal(ks[1], (B, C_META_IN), jnp.float32)

    def lin_init(k, out_d, in_d):
        bound = 1.0 / (in_d ** 0.5)
        kw, kb = jax.random.split(k)
        w = jax.random.uniform(kw, (out_d, in_d), jnp.float32, -bound, bound)
        b = jax.random.uniform(kb, (out_d,), jnp.float32, -bound, bound)
        return w, b

    def bn_init(k, n):
        k1, k2, k3, k4 = jax.random.split(k, 4)
        gamma = jax.random.uniform(k1, (n,), jnp.float32, 0.5, 1.5)
        beta = 0.1 * jax.random.normal(k2, (n,), jnp.float32)
        mean = 0.1 * jax.random.normal(k3, (n,), jnp.float32)
        var = jax.random.uniform(k4, (n,), jnp.float32, 0.5, 1.5)
        return gamma, beta, mean, var

    wm, bm = lin_init(ks[2], C_META, C_META_IN)          # nn.Linear(2, 4)
    w1, b1 = lin_init(ks[3], H1, C_FEAT + C_META)        # nn.Linear(1284, 512)
    w2, b2 = lin_init(ks[4], C_OUT, H1)                  # nn.Linear(512, 7)
    bn_m = bn_init(ks[5], C_META)                        # nn.BatchNorm1d(4)   (eval stats)
    bn_1 = bn_init(ks[6], H1)                            # nn.BatchNorm1d(512) (eval stats)

    params = dict(wm=wm, bm=bm, bn_m=bn_m, w1=w1, b1=b1, bn_1=bn_1, w2=w2, b2=b2)

    out = jax.block_until_ready(effnetv2_l_meta_head(features, meta, params))
    ref = effnetv2_l_meta_head_ref(features, meta, params)

    max_err = float(jnp.max(jnp.abs(out - ref)))
    assert out.shape == (B, C_OUT)
    # Tolerance reflects bf16 MXU operands over a 1280-deep contraction (f32 accumulation).
    assert jnp.allclose(out, ref, atol=3e-2, rtol=3e-2), f"max abs err {max_err}"
    print("KERNEL_OK")
</pallas_src>

<mosaic_0001>
module attributes {stable_mosaic.version = 11 : i64} {
  func.func @effnetv2_l_meta_head_kernel(%arg0: memref<2x1280xf32, #tpu.memory_space<vmem>>, %arg1: memref<2x2xf32, #tpu.memory_space<vmem>>, %arg2: memref<2x4xf32, #tpu.memory_space<vmem>>, %arg3: memref<1x4xf32, #tpu.memory_space<vmem>>, %arg4: memref<4x4xf32, #tpu.memory_space<vmem>>, %arg5: memref<1280x512xbf16, #tpu.memory_space<vmem>>, %arg6: memref<4x512xf32, #tpu.memory_space<vmem>>, %arg7: memref<1x512xf32, #tpu.memory_space<vmem>>, %arg8: memref<4x512xf32, #tpu.memory_space<vmem>>, %arg9: memref<512x7xbf16, #tpu.memory_space<vmem>>, %arg10: memref<1x7xf32, #tpu.memory_space<vmem>>, %arg11: memref<2x7xf32, #tpu.memory_space<vmem>>) attributes {dimension_semantics = [], scalar_prefetch = 0 : i64, scratch_operands = 0 : i64, tpu.core_type = #tpu.core_type<tc>} {
    %c0 = arith.constant 0 : index
    %c0_0 = arith.constant 0 : index
    %0 = vector.load %arg1[%c0, %c0_0] : memref<2x2xf32, #tpu.memory_space<vmem>>, vector<2x2xf32>
    %c0_1 = arith.constant 0 : index
    %c0_2 = arith.constant 0 : index
    %1 = vector.load %arg2[%c0_1, %c0_2] : memref<2x4xf32, #tpu.memory_space<vmem>>, vector<2x4xf32>
    %c0_3 = arith.constant 0 : index
    %c0_4 = arith.constant 0 : index
    %2 = vector.load %arg3[%c0_3, %c0_4] : memref<1x4xf32, #tpu.memory_space<vmem>>, vector<1x4xf32>
    %3 = vector.extract_strided_slice %0 {offsets = [0, 0], sizes = [2, 1], strides = [1, 1]} : vector<2x2xf32> to vector<2x1xf32>
    %4 = vector.extract_strided_slice %1 {offsets = [0, 0], sizes = [1, 4], strides = [1, 1]} : vector<2x4xf32> to vector<1x4xf32>
    %5 = vector.broadcast %3 : vector<2x1xf32> to vector<2x4xf32>
    %6 = vector.broadcast %4 : vector<1x4xf32> to vector<2x4xf32>
    %7 = arith.mulf %5, %6 : vector<2x4xf32>
    %8 = vector.broadcast %2 : vector<1x4xf32> to vector<2x4xf32>
    %9 = arith.addf %8, %7 : vector<2x4xf32>
    %10 = vector.extract_strided_slice %0 {offsets = [0, 1], sizes = [2, 1], strides = [1, 1]} : vector<2x2xf32> to vector<2x1xf32>
    %11 = vector.extract_strided_slice %1 {offsets = [1, 0], sizes = [1, 4], strides = [1, 1]} : vector<2x4xf32> to vector<1x4xf32>
    %12 = vector.broadcast %10 : vector<2x1xf32> to vector<2x4xf32>
    %13 = vector.broadcast %11 : vector<1x4xf32> to vector<2x4xf32>
    %14 = arith.mulf %12, %13 : vector<2x4xf32>
    %15 = arith.addf %9, %14 : vector<2x4xf32>
    %c0_5 = arith.constant 0 : index
    %c0_6 = arith.constant 0 : index
    %16 = vector.load %arg4[%c0_5, %c0_6] : memref<4x4xf32, #tpu.memory_space<vmem>>, vector<1x4xf32>
    %c1 = arith.constant 1 : index
    %c0_7 = arith.constant 0 : index
    %17 = vector.load %arg4[%c1, %c0_7] : memref<4x4xf32, #tpu.memory_space<vmem>>, vector<1x4xf32>
    %c2 = arith.constant 2 : index
    %c0_8 = arith.constant 0 : index
    %18 = vector.load %arg4[%c2, %c0_8] : memref<4x4xf32, #tpu.memory_space<vmem>>, vector<1x4xf32>
    %c3 = arith.constant 3 : index
    %c0_9 = arith.constant 0 : index
    %19 = vector.load %arg4[%c3, %c0_9] : memref<4x4xf32, #tpu.memory_space<vmem>>, vector<1x4xf32>
    %cst = arith.constant 9.99999974E-6 : f32
    %20 = vector.broadcast %cst : f32 to vector<1x4xf32>
    %21 = arith.addf %19, %20 : vector<1x4xf32>
    %22 = math.rsqrt %21 : vector<1x4xf32>
    %23 = arith.mulf %16, %22 : vector<1x4xf32>
    %24 = vector.broadcast %23 : vector<1x4xf32> to vector<2x4xf32>
    %25 = arith.mulf %15, %24 : vector<2x4xf32>
    %26 = arith.mulf %18, %23 : vector<1x4xf32>
    %27 = arith.subf %17, %26 : vector<1x4xf32>
    %28 = vector.broadcast %27 : vector<1x4xf32> to vector<2x4xf32>
    %29 = arith.addf %25, %28 : vector<2x4xf32>
    %cst_10 = arith.constant 0.000000e+00 : f32
    %30 = vector.broadcast %cst_10 : f32 to vector<2x4xf32>
    %31 = arith.subf %30, %29 : vector<2x4xf32>
    %32 = math.exp %31 : vector<2x4xf32>
    %cst_11 = arith.constant 1.000000e+00 : f32
    %33 = vector.broadcast %cst_11 : f32 to vector<2x4xf32>
    %34 = arith.addf %33, %32 : vector<2x4xf32>
    %35 = tpu.reciprocal %34 {approx = true} : vector<2x4xf32> -> vector<2x4xf32>
    %36 = arith.mulf %29, %35 : vector<2x4xf32>
    %c0_12 = arith.constant 0 : index
    %c0_13 = arith.constant 0 : index
    %37 = vector.load %arg0[%c0_12, %c0_13] : memref<2x1280xf32, #tpu.memory_space<vmem>>, vector<2x1280xf32>
    %38 = arith.truncf %37 : vector<2x1280xf32> to vector<2x1280xbf16>
    %c0_14 = arith.constant 0 : index
    %c0_15 = arith.constant 0 : index
    %39 = vector.load %arg5[%c0_14, %c0_15] : memref<1280x512xbf16, #tpu.memory_space<vmem>>, vector<1280x512xbf16>
    %cst_16 = arith.constant dense<0.000000e+00> : vector<2x512xf32>
    %40 = tpu.matmul %38, %39, %cst_16 {dimension_numbers = #tpu.dot_dimension_numbers<[1], [0], [0], [1], [0, 0, 1, 1], [], []>} : vector<2x1280xbf16>, vector<1280x512xbf16>, vector<2x512xf32> -> vector<2x512xf32>
    %c0_17 = arith.constant 0 : index
    %c0_18 = arith.constant 0 : index
    %41 = vector.load %arg7[%c0_17, %c0_18] : memref<1x512xf32, #tpu.memory_space<vmem>>, vector<1x512xf32>
    %42 = vector.broadcast %41 : vector<1x512xf32> to vector<2x512xf32>
    %43 = arith.addf %40, %42 : vector<2x512xf32>
    %44 = vector.extract_strided_slice %36 {offsets = [0, 0], sizes = [2, 1], strides = [1, 1]} : vector<2x4xf32> to vector<2x1xf32>
    %c0_19 = arith.constant 0 : index
    %c0_20 = arith.constant 0 : index
    %45 = vector.load %arg6[%c0_19, %c0_20] : memref<4x512xf32, #tpu.memory_space<vmem>>, vector<1x512xf32>
    %46 = vector.broadcast %44 : vector<2x1xf32> to vector<2x512xf32>
    %47 = vector.broadcast %45 : vector<1x512xf32> to vector<2x512xf32>
    %48 = arith.mulf %46, %47 : vector<2x512xf32>
    %49 = arith.addf %43, %48 : vector<2x512xf32>
    %50 = vector.extract_strided_slice %36 {offsets = [0, 1], sizes = [2, 1], strides = [1, 1]} : vector<2x4xf32> to vector<2x1xf32>
    %c1_21 = arith.constant 1 : index
    %c0_22 = arith.constant 0 : index
    %51 = vector.load %arg6[%c1_21, %c0_22] : memref<4x512xf32, #tpu.memory_space<vmem>>, vector<1x512xf32>
    %52 = vector.broadcast %50 : vector<2x1xf32> to vector<2x512xf32>
    %53 = vector.broadcast %51 : vector<1x512xf32> to vector<2x512xf32>
    %54 = arith.mulf %52, %53 : vector<2x512xf32>
    %55 = arith.addf %49, %54 : vector<2x512xf32>
    %56 = vector.extract_strided_slice %36 {offsets = [0, 2], sizes = [2, 1], strides = [1, 1]} : vector<2x4xf32> to vector<2x1xf32>
    %c2_23 = arith.constant 2 : index
    %c0_24 = arith.constant 0 : index
    %57 = vector.load %arg6[%c2_23, %c0_24] : memref<4x512xf32, #tpu.memory_space<vmem>>, vector<1x512xf32>
    %58 = vector.broadcast %56 : vector<2x1xf32> to vector<2x512xf32>
    %59 = vector.broadcast %57 : vector<1x512xf32> to vector<2x512xf32>
    %60 = arith.mulf %58, %59 : vector<2x512xf32>
    %61 = arith.addf %55, %60 : vector<2x512xf32>
    %62 = vector.extract_strided_slice %36 {offsets = [0, 3], sizes = [2, 1], strides = [1, 1]} : vector<2x4xf32> to vector<2x1xf32>
    %c3_25 = arith.constant 3 : index
    %c0_26 = arith.constant 0 : index
    %63 = vector.load %arg6[%c3_25, %c0_26] : memref<4x512xf32, #tpu.memory_space<vmem>>, vector<1x512xf32>
    %64 = vector.broadcast %62 : vector<2x1xf32> to vector<2x512xf32>
    %65 = vector.broadcast %63 : vector<1x512xf32> to vector<2x512xf32>
    %66 = arith.mulf %64, %65 : vector<2x512xf32>
    %67 = arith.addf %61, %66 : vector<2x512xf32>
    %c0_27 = arith.constant 0 : index
    %c0_28 = arith.constant 0 : index
    %68 = vector.load %arg8[%c0_27, %c0_28] : memref<4x512xf32, #tpu.memory_space<vmem>>, vector<1x512xf32>
    %c1_29 = arith.constant 1 : index
    %c0_30 = arith.constant 0 : index
    %69 = vector.load %arg8[%c1_29, %c0_30] : memref<4x512xf32, #tpu.memory_space<vmem>>, vector<1x512xf32>
    %c2_31 = arith.constant 2 : index
    %c0_32 = arith.constant 0 : index
    %70 = vector.load %arg8[%c2_31, %c0_32] : memref<4x512xf32, #tpu.memory_space<vmem>>, vector<1x512xf32>
    %c3_33 = arith.constant 3 : index
    %c0_34 = arith.constant 0 : index
    %71 = vector.load %arg8[%c3_33, %c0_34] : memref<4x512xf32, #tpu.memory_space<vmem>>, vector<1x512xf32>
    %cst_35 = arith.constant 9.99999974E-6 : f32
    %72 = vector.broadcast %cst_35 : f32 to vector<1x512xf32>
    %73 = arith.addf %71, %72 : vector<1x512xf32>
    %74 = math.rsqrt %73 : vector<1x512xf32>
    %75 = arith.mulf %68, %74 : vector<1x512xf32>
    %76 = vector.broadcast %75 : vector<1x512xf32> to vector<2x512xf32>
    %77 = arith.mulf %67, %76 : vector<2x512xf32>
    %78 = arith.mulf %70, %75 : vector<1x512xf32>
    %79 = arith.subf %69, %78 : vector<1x512xf32>
    %80 = vector.broadcast %79 : vector<1x512xf32> to vector<2x512xf32>
    %81 = arith.addf %77, %80 : vector<2x512xf32>
    %cst_36 = arith.constant 0.000000e+00 : f32
    %82 = vector.broadcast %cst_36 : f32 to vector<2x512xf32>
    %83 = arith.subf %82, %81 : vector<2x512xf32>
    %84 = math.exp %83 : vector<2x512xf32>
    %cst_37 = arith.constant 1.000000e+00 : f32
    %85 = vector.broadcast %cst_37 : f32 to vector<2x512xf32>
    %86 = arith.addf %85, %84 : vector<2x512xf32>
    %87 = tpu.reciprocal %86 {approx = true} : vector<2x512xf32> -> vector<2x512xf32>
    %88 = arith.mulf %81, %87 : vector<2x512xf32>
    %89 = arith.truncf %88 : vector<2x512xf32> to vector<2x512xbf16>
    %c0_38 = arith.constant 0 : index
    %c0_39 = arith.constant 0 : index
    %90 = vector.load %arg9[%c0_38, %c0_39] : memref<512x7xbf16, #tpu.memory_space<vmem>>, vector<512x7xbf16>
    %cst_40 = arith.constant dense<0.000000e+00> : vector<2x7xf32>
    %91 = tpu.matmul %89, %90, %cst_40 {dimension_numbers = #tpu.dot_dimension_numbers<[1], [0], [0], [1], [0, 0, 1, 1], [], []>} : vector<2x512xbf16>, vector<512x7xbf16>, vector<2x7xf32> -> vector<2x7xf32>
    %c0_41 = arith.constant 0 : index
    %c0_42 = arith.constant 0 : index
    %92 = vector.load %arg10[%c0_41, %c0_42] : memref<1x7xf32, #tpu.memory_space<vmem>>, vector<1x7xf32>
    %93 = vector.broadcast %92 : vector<1x7xf32> to vector<2x7xf32>
    %94 = arith.addf %91, %93 : vector<2x7xf32>
    %c0_43 = arith.constant 0 : index
    %c0_44 = arith.constant 0 : index
    %95 = vector.load %arg11[%c0_43, %c0_44] : memref<2x7xf32, #tpu.memory_space<vmem>>, vector<2x7xf32>
    tpu.vector_store %arg11[%c0_43, %c0_44], %94 {strides = array<i32>} : memref<2x7xf32, #tpu.memory_space<vmem>>, vector<2x7xf32>,
    return
  }
}

</mosaic_0001>

<llo_original>
// kernel: tpu_custom_call.1
$region0: #{tpu_custom_call.1}
  #allocation0 [shape = 'u32[]', space=smem, size = 0x4, offset = 0x4, fixed_abs, tag = 'smem constant byte address 0x4 - core index']
  #allocation1 [shape = 'u32[144,128]{1,0:T(1,128)}', space=vmem, size = 0x12000, scoped, tag = 'internal scratch']
  %s0 = inlined_call_operand.hbm [shape: f32[2,1280], index: 0, kind: input, shape index: {}]
  %s1 = inlined_call_operand.hbm [shape: f32[2,2], index: 1, kind: input, shape index: {}]
  %s2 = inlined_call_operand.hbm [shape: f32[2,4], index: 2, kind: input, shape index: {}]
  %s3 = inlined_call_operand.hbm [shape: f32[1,4], index: 3, kind: input, shape index: {}]
  %s4 = inlined_call_operand.hbm [shape: f32[4,4], index: 4, kind: input, shape index: {}]
  %s5 = inlined_call_operand.hbm [shape: bf16[1280,512], index: 5, kind: input, shape index: {}]
  %s6 = inlined_call_operand.hbm [shape: f32[4,512], index: 6, kind: input, shape index: {}]
  %s7 = inlined_call_operand.hbm [shape: f32[1,512], index: 7, kind: input, shape index: {}]
  %s8 = inlined_call_operand.hbm [shape: f32[4,512], index: 8, kind: input, shape index: {}]
  %s9 = inlined_call_operand.vmem [shape: bf16[512,7], index: 9, kind: input, shape index: {}]
  %s10 = inlined_call_operand.hbm [shape: f32[1,7], index: 10, kind: input, shape index: {}]
  %s11 = inlined_call_operand.hbm [shape: f32[2,7], index: 11, kind: output, shape index: {}]
  %s12 = sld [smem:[#allocation0]]
  $region94: #{tpu_custom_call.1} parent=0
    _
  %s14 = ssub.s32 1, %s12
  %s15 = scalar_select 0, %s14, %s12
  $region1: #{tpu_custom_call.1} parent=0
    #allocation2 [shape = 'u8[10240]{0}', space=vmem, size = 0x2800, scoped, tag = 'input window, operand 0, single buffered']
    #allocation3 [shape = 's32[1]{0}', space=sflag, size = 0x4, scoped, tag = 'scoped memory for tpu_custom_call.1']
    #allocation4 [shape = 's32[1]{0}', space=sflag, size = 0x4, scoped, tag = 'scoped memory for tpu_custom_call.1']
    #allocation5 [shape = 'u8[1024]{0}', space=vmem, size = 0x400, scoped, tag = 'input window, operand 1, single buffered']
    #allocation6 [shape = 's32[1]{0}', space=sflag, size = 0x4, scoped, tag = 'scoped memory for tpu_custom_call.1']
    #allocation7 [shape = 'u8[1024]{0}', space=vmem, size = 0x400, scoped, tag = 'input window, operand 2, single buffered']
    #allocation8 [shape = 'u8[512]{0}', space=vmem, size = 0x400, scoped, tag = 'input window, operand 3, single buffered']
    #allocation9 [shape = 's32[1]{0}', space=sflag, size = 0x4, scoped, tag = 'scoped memory for tpu_custom_call.1']
    #allocation10 [shape = 'u8[2048]{0}', space=vmem, size = 0x800, scoped, tag = 'input window, operand 4, single buffered']
    #allocation11 [shape = 'u8[1310720]{0}', space=vmem, size = 0x140000, scoped, tag = 'input window, operand 5, single buffered']
    #allocation12 [shape = 's32[1]{0}', space=sflag, size = 0x4, scoped, tag = 'scoped memory for tpu_custom_call.1']
    #allocation13 [shape = 'u8[8192]{0}', space=vmem, size = 0x2000, scoped, tag = 'input window, operand 6, single buffered']
    #allocation14 [shape = 'u8[2048]{0}', space=vmem, size = 0x800, scoped, tag = 'input window, operand 7, single buffered']
    #allocation15 [shape = 's32[1]{0}', space=sflag, size = 0x4, scoped, tag = 'scoped memory for tpu_custom_call.1']
    #allocation16 [shape = 'u8[8192]{0}', space=vmem, size = 0x2000, scoped, tag = 'input window, operand 8, single buffered']
    #allocation17 [shape = 'u8[512]{0}', space=vmem, size = 0x400, scoped, tag = 'input window, operand 10, single buffered']
    #allocation18 [shape = 's32[1]{0}', space=sflag, size = 0x4, scoped, tag = 'scoped memory for tpu_custom_call.1']
    #allocation19 [shape = 'u8[1024]{0}', space=vmem, size = 0x400, scoped, tag = 'output window, operand 0, single buffered']
    %16 = vsyncpa [#allocation3], 0
    %17 = vsyncpa [#allocation6], 0
    %18 = vsyncpa [#allocation9], 0
    %19 = vsyncpa [#allocation12], 0
    %20 = vsyncpa [#allocation15], 0
    %21 = vsyncpa [#allocation18], 0
    %22 = vsyncpa [#allocation4], 0
    // Predicated region
    $region2: #{tpu_custom_call.1} parent=1 // pred_check
      _
    $region3: #{tpu_custom_call.1} parent=1 // pred_check_branch
      %24 = sbr.rel (0) target = $region5
    $region4: #{tpu_custom_call.1} parent=1 // pred_region
      %s26 = ssub.s32 320, 320
      %27 = vsyncadd [#allocation3], %s26
      %s29 = sshll.u32 [#allocation2], 4
      %s30 = int_to_ptr.vmem [resolvable:$true] %s29
      %32 = dma.hbm_to_vmem [thread:$0]  %s0, 320, %s30, [#allocation3]
    $region5: #{tpu_custom_call.1} parent=1 // pred_fallthru
      _
    // Predicated region
    $region6: #{tpu_custom_call.1} parent=1 // pred_check
      _
    $region7: #{tpu_custom_call.1} parent=1 // pred_check_branch
      %34 = sbr.rel (0) target = $region9
    $region8: #{tpu_custom_call.1} parent=1 // pred_region
      %s36 = ssub.s32 32, 32
      %37 = vsyncadd [#allocation6], %s36
      %s39 = sshll.u32 [#allocation5], 4
      %s40 = int_to_ptr.vmem [resolvable:$true] %s39
      %42 = dma.hbm_to_vmem [thread:$0]  %s1, 32, %s40, [#allocation6]
    $region9: #{tpu_custom_call.1} parent=1 // pred_fallthru
      _
    // Predicated region
    $region10: #{tpu_custom_call.1} parent=1 // pred_check
      _
    $region11: #{tpu_custom_call.1} parent=1 // pred_check_branch
      %44 = sbr.rel (0) target = $region13
    $region12: #{tpu_custom_call.1} parent=1 // pred_region
      %s46 = ssub.s32 32, 32
      %47 = vsyncadd [#allocation6], %s46
      %s49 = sshll.u32 [#allocation7], 4
      %s50 = int_to_ptr.vmem [resolvable:$true] %s49
      %52 = dma.hbm_to_vmem [thread:$0]  %s2, 32, %s50, [#allocation6]
    $region13: #{tpu_custom_call.1} parent=1 // pred_fallthru
      _
    // Predicated region
    $region14: #{tpu_custom_call.1} parent=1 // pred_check
      _
    $region15: #{tpu_custom_call.1} parent=1 // pred_check_branch
      %54 = sbr.rel (0) target = $region17
    $region16: #{tpu_custom_call.1} parent=1 // pred_region
      %s56 = ssub.s32 16, 16
      %57 = vsyncadd [#allocation9], %s56
      %s59 = sshll.u32 [#allocation8], 4
      %s60 = int_to_ptr.vmem [resolvable:$true] %s59
      %62 = dma.hbm_to_vmem [thread:$0]  %s3, 16, %s60, [#allocation9]
    $region17: #{tpu_custom_call.1} parent=1 // pred_fallthru
      _
    // Predicated region
    $region18: #{tpu_custom_call.1} parent=1 // pred_check
      _
    $region19: #{tpu_custom_call.1} parent=1 // pred_check_branch
      %64 = sbr.rel (0) target = $region21
    $region20: #{tpu_custom_call.1} parent=1 // pred_region
      %s66 = ssub.s32 64, 64
      %67 = vsyncadd [#allocation9], %s66
      %s69 = sshll.u32 [#allocation10], 4
      %s70 = int_to_ptr.vmem [resolvable:$true] %s69
      %72 = dma.hbm_to_vmem [thread:$0]  %s4, 64, %s70, [#allocation9]
    $region21: #{tpu_custom_call.1} parent=1 // pred_fallthru
      _
    // Predicated region
    $region22: #{tpu_custom_call.1} parent=1 // pred_check
      _
    $region23: #{tpu_custom_call.1} parent=1 // pred_check_branch
      %74 = sbr.rel (0) target = $region25
    $region24: #{tpu_custom_call.1} parent=1 // pred_region
      %s76 = ssub.s32 40960, 40960
      %77 = vsyncadd [#allocation12], %s76
      %s78 = sshll.u32 [#allocation11], 4
      %s79 = int_to_ptr.vmem [resolvable:$true] %s78
      %84 = dma.hbm_to_vmem [thread:$0]  %s5, 40960, %s79, [#allocation12], 256, 256, 16
    $region25: #{tpu_custom_call.1} parent=1 // pred_fallthru
      _
    // Predicated region
    $region26: #{tpu_custom_call.1} parent=1 // pred_check
      _
    $region27: #{tpu_custom_call.1} parent=1 // pred_check_branch
      %86 = sbr.rel (0) target = $region29
    $region28: #{tpu_custom_call.1} parent=1 // pred_region
      %s88 = ssub.s32 256, 256
      %89 = vsyncadd [#allocation12], %s88
      %s91 = sshll.u32 [#allocation13], 4
      %s92 = int_to_ptr.vmem [resolvable:$true] %s91
      %94 = dma.hbm_to_vmem [thread:$0]  %s6, 256, %s92, [#allocation12]
    $region29: #{tpu_custom_call.1} parent=1 // pred_fallthru
      _
    // Predicated region
    $region30: #{tpu_custom_call.1} parent=1 // pred_check
      _
    $region31: #{tpu_custom_call.1} parent=1 // pred_check_branch
      %96 = sbr.rel (0) target = $region33
    $region32: #{tpu_custom_call.1} parent=1 // pred_region
      %s98 = ssub.s32 64, 64
      %99 = vsyncadd [#allocation15], %s98
      %s101 = sshll.u32 [#allocation14], 4
      %s102 = int_to_ptr.vmem [resolvable:$true] %s101
      %104 = dma.hbm_to_vmem [thread:$0]  %s7, 64, %s102, [#allocation15]
    $region33: #{tpu_custom_call.1} parent=1 // pred_fallthru
      _
    // Predicated region
    $region34: #{tpu_custom_call.1} parent=1 // pred_check
      _
    $region35: #{tpu_custom_call.1} parent=1 // pred_check_branch
      %106 = sbr.rel (0) target = $region37
    $region36: #{tpu_custom_call.1} parent=1 // pred_region
      %s108 = ssub.s32 256, 256
      %109 = vsyncadd [#allocation15], %s108
      %s111 = sshll.u32 [#allocation16], 4
      %s112 = int_to_ptr.vmem [resolvable:$true] %s111
      %114 = dma.hbm_to_vmem [thread:$0]  %s8, 256, %s112, [#allocation15]
    $region37: #{tpu_custom_call.1} parent=1 // pred_fallthru
      _
    // Predicated region
    $region38: #{tpu_custom_call.1} parent=1 // pred_check
      _
    $region39: #{tpu_custom_call.1} parent=1 // pred_check_branch
      %116 = sbr.rel (0) target = $region41
    $region40: #{tpu_custom_call.1} parent=1 // pred_region
      _
    $region41: #{tpu_custom_call.1} parent=1 // pred_fallthru
      _
    // Predicated region
    $region42: #{tpu_custom_call.1} parent=1 // pred_check
      _
    $region43: #{tpu_custom_call.1} parent=1 // pred_check_branch
      %118 = sbr.rel (0) target = $region45
    $region44: #{tpu_custom_call.1} parent=1 // pred_region
      %s120 = ssub.s32 16, 16
      %121 = vsyncadd [#allocation18], %s120
      %s123 = sshll.u32 [#allocation17], 4
      %s124 = int_to_ptr.vmem [resolvable:$true] %s123
      %126 = dma.hbm_to_vmem [thread:$0]  %s10, 16, %s124, [#allocation18]
    $region45: #{tpu_custom_call.1} parent=1 // pred_fallthru
      _
    // Predicated region
    $region46: #{tpu_custom_call.1} parent=1 // pred_check
      _
    $region47: #{tpu_custom_call.1} parent=1 // pred_check_branch
      %128 = sbr.rel (0) target = $region49
    $region48: #{tpu_custom_call.1} parent=1 // pred_region
      %129 = dma.done [#allocation3], 320
    $region49: #{tpu_custom_call.1} parent=1 // pred_fallthru
      _
    // Predicated region
    $region50: #{tpu_custom_call.1} parent=1 // pred_check
      _
    $region51: #{tpu_custom_call.1} parent=1 // pred_check_branch
      %131 = sbr.rel (0) target = $region53
    $region52: #{tpu_custom_call.1} parent=1 // pred_region
      %132 = dma.done [#allocation6], 32
    $region53: #{tpu_custom_call.1} parent=1 // pred_fallthru
      _
    // Predicated region
    $region54: #{tpu_custom_call.1} parent=1 // pred_check
      _
    $region55: #{tpu_custom_call.1} parent=1 // pred_check_branch
      %134 = sbr.rel (0) target = $region57
    $region56: #{tpu_custom_call.1} parent=1 // pred_region
      %135 = dma.done [#allocation6], 32
    $region57: #{tpu_custom_call.1} parent=1 // pred_fallthru
      _
    // Predicated region
    $region58: #{tpu_custom_call.1} parent=1 // pred_check
      _
    $region59: #{tpu_custom_call.1} parent=1 // pred_check_branch
      %137 = sbr.rel (0) target = $region61
    $region60: #{tpu_custom_call.1} parent=1 // pred_region
      %138 = dma.done [#allocation9], 16
    $region61: #{tpu_custom_call.1} parent=1 // pred_fallthru
      _
    // Predicated region
    $region62: #{tpu_custom_call.1} parent=1 // pred_check
      _
    $region63: #{tpu_custom_call.1} parent=1 // pred_check_branch
      %140 = sbr.rel (0) target = $region65
    $region64: #{tpu_custom_call.1} parent=1 // pred_region
      %141 = dma.done [#allocation9], 64
    $region65: #{tpu_custom_call.1} parent=1 // pred_fallthru
      _
    // Predicated region
    $region66: #{tpu_custom_call.1} parent=1 // pred_check
      _
    $region67: #{tpu_custom_call.1} parent=1 // pred_check_branch
      %143 = sbr.rel (0) target = $region69
    $region68: #{tpu_custom_call.1} parent=1 // pred_region
      %144 = dma.done [#allocation12], 40960
    $region69: #{tpu_custom_call.1} parent=1 // pred_fallthru
      _
    // Predicated region
    $region70: #{tpu_custom_call.1} parent=1 // pred_check
      _
    $region71: #{tpu_custom_call.1} parent=1 // pred_check_branch
      %146 = sbr.rel (0) target = $region73
    $region72: #{tpu_custom_call.1} parent=1 // pred_region
      %147 = dma.done [#allocation12], 256
    $region73: #{tpu_custom_call.1} parent=1 // pred_fallthru
      _
    // Predicated region
    $region74: #{tpu_custom_call.1} parent=1 // pred_check
      _
    $region75: #{tpu_custom_call.1} parent=1 // pred_check_branch
      %149 = sbr.rel (0) target = $region77
    $region76: #{tpu_custom_call.1} parent=1 // pred_region
      %150 = dma.done [#allocation15], 64
    $region77: #{tpu_custom_call.1} parent=1 // pred_fallthru
      _
    // Predicated region
    $region78: #{tpu_custom_call.1} parent=1 // pred_check
      _
    $region79: #{tpu_custom_call.1} parent=1 // pred_check_branch
      %152 = sbr.rel (0) target = $region81
    $region80: #{tpu_custom_call.1} parent=1 // pred_region
      %153 = dma.done [#allocation15], 256
    $region81: #{tpu_custom_call.1} parent=1 // pred_fallthru
      _
    // Predicated region
    $region82: #{tpu_custom_call.1} parent=1 // pred_check
      _
    $region83: #{tpu_custom_call.1} parent=1 // pred_check_branch
      %155 = sbr.rel (0) target = $region85
    $region84: #{tpu_custom_call.1} parent=1 // pred_region
      %156 = dma.done [#allocation18], 16
    $region85: #{tpu_custom_call.1} parent=1 // pred_fallthru
      _
    %v158 = vld [vmem:[#allocation5] sm:$0x3]
    %v159 = vld [vmem:[#allocation7] sm:$0x3]
    %v160 = vld [vmem:[#allocation8] sm:$0x1]
    %162 = vset.pattern.permute.xlu0 0
    %163 = vperm.xlu0 %162, %v158
    %v164 = vpop.permute.xlu0 %163
    %v166 = vlaneseq
    %v167 = vshrl.u32 %v166, 7
    %v168 = vsub.s32 0, %v167
    %v169 = vrot.slane %v159, %v168
    %v170 = vmul.f32 %v164, %v169
    %v172 = vlaneseq
    %v173 = vshrl.u32 %v172, 7
    %v174 = vsub.s32 0, %v173
    %v175 = vrot.slane %v160, %v174
    %v177 = vadd.f32 %v175, %v170
    %178 = vset.pattern.permute.xlu0 1
    %179 = vperm.xlu0 %178, %v158
    %v180 = vpop.permute.xlu0 %179
    %v182 = vlaneseq
    %v183 = vshrl.u32 %v182, 7
    %v184 = vsub.s32 1, %v183
    %v185 = vrot.slane %v159, %v184
    %v186 = vmul.f32 %v180, %v185
    %v187 = vadd.f32 %v177, %v186
    %v188 = vld [vmem:[#allocation10] sm:$0x1]
    %v189 = vld [vmem:[#allocation10 + $0x1] sm:$0x1]
    %v190 = vld [vmem:[#allocation10 + $0x2] sm:$0x1]
    %v191 = vld [vmem:[#allocation10 + $0x3] sm:$0x1]
    %v192 = vadd.f32 %v191, 1e-05
    %v193 = vrsqrt.pop %v192
    %v194 = vmul.f32 %v188, %v193
    %v195 = vlaneseq
    %v196 = vshrl.u32 %v195, 7
    %v197 = vsub.s32 0, %v196
    %v198 = vrot.slane %v194, %v197
    %v199 = vmul.f32 %v187, %v198
    %v200 = vmul.f32 %v190, %v194
    %v201 = vsub.f32 %v189, %v200
    %v202 = vlaneseq
    %v203 = vshrl.u32 %v202, 7
    %v204 = vsub.s32 0, %v203
    %v205 = vrot.slane %v201, %v204
    %v206 = vadd.f32 %v199, %v205
    %v207 = vsub.f32 0.0, %v206
    %v208 = vmul.f32 %v207, 1.442695
    %v209 = vpow.pop %v208
    %v210 = vadd.f32 %v209, 1.0
    %v211 = vrcp.pop %v210
    %v212 = vmul.f32 %v206, %v211
    %v213 = vld [vmem:[#allocation2] sm:$0xff]
    %v214 = vld [vmem:[#allocation2 + $0x8] sm:$0xff]
    %v215 = vld [vmem:[#allocation2 + $0x10] sm:$0xf]
    %v219 = vcombine.high %v213, %v213
    %v221 = vunpack.c.l.s4 1983009808
    %v222 = vunpack.c.0.s8 %v221
    %v223 = vlaneseq
    %v224 = vshrl.u32 %v223, 7
    %v225 = vsub.s32 %v222, %v224
    %v226 = vrot.slane %v213, %v225
    %v228 = vunpack.c.l.s4 1983009808
    %v229 = vunpack.c.0.s8 %v228
    %v230 = vlaneseq
    %v231 = vshrl.u32 %v230, 7
    %v232 = vsub.s32 %v229, %v231
    %v233 = vrot.slane %v219, %v232
    %v234 = vcombine.high %v226, %v226
    %v235 = vcombine.high %v233, %v233
    %v236 = vcombine.high %v214, %v214
    %v238 = vunpack.c.l.s4 1983009808
    %v239 = vunpack.c.0.s8 %v238
    %v240 = vlaneseq
    %v241 = vshrl.u32 %v240, 7
    %v242 = vsub.s32 %v239, %v241
    %v243 = vrot.slane %v214, %v242
    %v245 = vunpack.c.l.s4 1983009808
    %v246 = vunpack.c.0.s8 %v245
    %v247 = vlaneseq
    %v248 = vshrl.u32 %v247, 7
    %v249 = vsub.s32 %v246, %v248
    %v250 = vrot.slane %v236, %v249
    %v251 = vcombine.high %v243, %v243
    %v252 = vcombine.high %v250, %v250
    %v254 = vunpack.c.l.s4 1983009808
    %v255 = vunpack.c.0.s8 %v254
    %v256 = vlaneseq
    %v257 = vshrl.u32 %v256, 7
    %v258 = vsub.s32 %v255, %v257
    %v259 = vrot.slane %v215, %v258
    %v260 = vcombine.high %v259, %v259
    %v271 = vpack.c.bf16 %v226, %v226
    %v272 = vpack.c.bf16 %v234, %v234
    %v273 = vpack.c.bf16 %v233, %v233
    %v274 = vpack.c.bf16 %v235, %v235
    %v275 = vpack.c.bf16 %v243, %v243
    %v276 = vpack.c.bf16 %v251, %v251
    %v277 = vpack.c.bf16 %v250, %v250
    %v278 = vpack.c.bf16 %v252, %v252
    %v279 = vpack.c.bf16 %v259, %v259
    %v280 = vpack.c.bf16 %v260, %v260
    %v281 = vld [vmem:[#allocation11] sm:$0xff]
    %v282 = vld [vmem:[#allocation11 + $0x8] sm:$0xff]
    %v283 = vld [vmem:[#allocation11 + $0x10] sm:$0xff]
    %v284 = vld [vmem:[#allocation11 + $0x18] sm:$0xff]
    %v285 = vld [vmem:[#allocation11 + $0x20] sm:$0xff]
    %v286 = vld [vmem:[#allocation11 + $0x28] sm:$0xff]
    %v287 = vld [vmem:[#allocation11 + $0x30] sm:$0xff]
    %v288 = vld [vmem:[#allocation11 + $0x38] sm:$0xff]
    %v289 = vld [vmem:[#allocation11 + $0x40] sm:$0xff]
    %v290 = vld [vmem:[#allocation11 + $0x48] sm:$0xff]
    %v291 = vld [vmem:[#allocation11 + $0x50] sm:$0xff]
    %v292 = vld [vmem:[#allocation11 + $0x58] sm:$0xff]
    %v293 = vld [vmem:[#allocation11 + $0x60] sm:$0xff]
    %v294 = vld [vmem:[#allocation11 + $0x68] sm:$0xff]
    %v295 = vld [vmem:[#allocation11 + $0x70] sm:$0xff]
    %v296 = vld [vmem:[#allocation11 + $0x78] sm:$0xff]
    %v297 = vld [vmem:[#allocation11 + $0x80] sm:$0xff]
    %v298 = vld [vmem:[#allocation11 + $0x88] sm:$0xff]
    %v299 = vld [vmem:[#allocation11 + $0x90] sm:$0xff]
    %v300 = vld [vmem:[#allocation11 + $0x98] sm:$0xff]
    %v301 = vld [vmem:[#allocation11 + $0xa0] sm:$0xff]
    %v302 = vld [vmem:[#allocation11 + $0xa8] sm:$0xff]
    %v303 = vld [vmem:[#allocation11 + $0xb0] sm:$0xff]
    %v304 = vld [vmem:[#allocation11 + $0xb8] sm:$0xff]
    %v305 = vld [vmem:[#allocation11 + $0xc0] sm:$0xff]
    %v306 = vld [vmem:[#allocation11 + $0xc8] sm:$0xff]
    %v307 = vld [vmem:[#allocation11 + $0xd0] sm:$0xff]
    %v308 = vld [vmem:[#allocation11 + $0xd8] sm:$0xff]
    %v309 = vld [vmem:[#allocation11 + $0xe0] sm:$0xff]
    %v310 = vld [vmem:[#allocation11 + $0xe8] sm:$0xff]
    %v311 = vld [vmem:[#allocation11 + $0xf0] sm:$0xff]
    %v312 = vld [vmem:[#allocation11 + $0xf8] sm:$0xff]
    %v313 = vld [vmem:[#allocation11 + $0x100] sm:$0xff]
    %v314 = vld [vmem:[#allocation11 + $0x108] sm:$0xff]
    %v315 = vld [vmem:[#allocation11 + $0x110] sm:$0xff]
    %v316 = vld [vmem:[#allocation11 + $0x118] sm:$0xff]
    %v317 = vld [vmem:[#allocation11 + $0x120] sm:$0xff]
    %v318 = vld [vmem:[#allocation11 + $0x128] sm:$0xff]
    %v319 = vld [vmem:[#allocation11 + $0x130] sm:$0xff]
    %v320 = vld [vmem:[#allocation11 + $0x138] sm:$0xff]
    %v321 = vld [vmem:[#allocation11 + $0x140] sm:$0xff]
    %v322 = vld [vmem:[#allocation11 + $0x148] sm:$0xff]
    %v323 = vld [vmem:[#allocation11 + $0x150] sm:$0xff]
    %v324 = vld [vmem:[#allocation11 + $0x158] sm:$0xff]
    %v325 = vld [vmem:[#allocation11 + $0x160] sm:$0xff]
    %v326 = vld [vmem:[#allocation11 + $0x168] sm:$0xff]
    %v327 = vld [vmem:[#allocation11 + $0x170] sm:$0xff]
    %v328 = vld [vmem:[#allocation11 + $0x178] sm:$0xff]
    %v329 = vld [vmem:[#allocation11 + $0x180] sm:$0xff]
    %v330 = vld [vmem:[#allocation11 + $0x188] sm:$0xff]
    %v331 = vld [vmem:[#allocation11 + $0x190] sm:$0xff]
    %v332 = vld [vmem:[#allocation11 + $0x198] sm:$0xff]
    %v333 = vld [vmem:[#allocation11 + $0x1a0] sm:$0xff]
    %v334 = vld [vmem:[#allocation11 + $0x1a8] sm:$0xff]
    %v335 = vld [vmem:[#allocation11 + $0x1b0] sm:$0xff]
    %v336 = vld [vmem:[#allocation11 + $0x1b8] sm:$0xff]
    %v337 = vld [vmem:[#allocation11 + $0x1c0] sm:$0xff]
    %v338 = vld [vmem:[#allocation11 + $0x1c8] sm:$0xff]
    %v339 = vld [vmem:[#allocation11 + $0x1d0] sm:$0xff]
    %v340 = vld [vmem:[#allocation11 + $0x1d8] sm:$0xff]
    %v341 = vld [vmem:[#allocation11 + $0x1e0] sm:$0xff]
    %v342 = vld [vmem:[#allocation11 + $0x1e8] sm:$0xff]
    %v343 = vld [vmem:[#allocation11 + $0x1f0] sm:$0xff]
    %v344 = vld [vmem:[#allocation11 + $0x1f8] sm:$0xff]
    %v345 = vld [vmem:[#allocation11 + $0x200] sm:$0xff]
    %v346 = vld [vmem:[#allocation11 + $0x208] sm:$0xff]
    %v347 = vld [vmem:[#allocation11 + $0x210] sm:$0xff]
    %v348 = vld [vmem:[#allocation11 + $0x218] sm:$0xff]
    %v349 = vld [vmem:[#allocation11 + $0x220] sm:$0xff]
    %v350 = vld [vmem:[#allocation11 + $0x228] sm:$0xff]
    %v351 = vld [vmem:[#allocation11 + $0x230] sm:$0xff]
    %v352 = vld [vmem:[#allocation11 + $0x238] sm:$0xff]
    %v353 = vld [vmem:[#allocation11 + $0x240] sm:$0xff]
    %v354 = vld [vmem:[#allocation11 + $0x248] sm:$0xff]
    %v355 = vld [vmem:[#allocation11 + $0x250] sm:$0xff]
    %v356 = vld [vmem:[#allocation11 + $0x258] sm:$0xff]
    %v357 = vld [vmem:[#allocation11 + $0x260] sm:$0xff]
    %v358 = vld [vmem:[#allocation11 + $0x268] sm:$0xff]
    %v359 = vld [vmem:[#allocation11 + $0x270] sm:$0xff]
    %v360 = vld [vmem:[#allocation11 + $0x278] sm:$0xff]
    %v361 = vld [vmem:[#allocation11 + $0x280] sm:$0xff]
    %v362 = vld [vmem:[#allocation11 + $0x288] sm:$0xff]
    %v363 = vld [vmem:[#allocation11 + $0x290] sm:$0xff]
    %v364 = vld [vmem:[#allocation11 + $0x298] sm:$0xff]
    %v365 = vld [vmem:[#allocation11 + $0x2a0] sm:$0xff]
    %v366 = vld [vmem:[#allocation11 + $0x2a8] sm:$0xff]
    %v367 = vld [vmem:[#allocation11 + $0x2b0] sm:$0xff]
    %v368 = vld [vmem:[#allocation11 + $0x2b8] sm:$0xff]
    %v369 = vld [vmem:[#allocation11 + $0x2c0] sm:$0xff]
    %v370 = vld [vmem:[#allocation11 + $0x2c8] sm:$0xff]
    %v371 = vld [vmem:[#allocation11 + $0x2d0] sm:$0xff]
    %v372 = vld [vmem:[#allocation11 + $0x2d8] sm:$0xff]
    %v373 = vld [vmem:[#allocation11 + $0x2e0] sm:$0xff]
    %v374 = vld [vmem:[#allocation11 + $0x2e8] sm:$0xff]
    %v375 = vld [vmem:[#allocation11 + $0x2f0] sm:$0xff]
    %v376 = vld [vmem:[#allocation11 + $0x2f8] sm:$0xff]
    %v377 = vld [vmem:[#allocation11 + $0x300] sm:$0xff]
    %v378 = vld [vmem:[#allocation11 + $0x308] sm:$0xff]
    %v379 = vld [vmem:[#allocation11 + $0x310] sm:$0xff]
    %v380 = vld [vmem:[#allocation11 + $0x318] sm:$0xff]
    %v381 = vld [vmem:[#allocation11 + $0x320] sm:$0xff]
    %v382 = vld [vmem:[#allocation11 + $0x328] sm:$0xff]
    %v383 = vld [vmem:[#allocation11 + $0x330] sm:$0xff]
    %v384 = vld [vmem:[#allocation11 + $0x338] sm:$0xff]
    %v385 = vld [vmem:[#allocation11 + $0x340] sm:$0xff]
    %v386 = vld [vmem:[#allocation11 + $0x348] sm:$0xff]
    %v387 = vld [vmem:[#allocation11 + $0x350] sm:$0xff]
    %v388 = vld [vmem:[#allocation11 + $0x358] sm:$0xff]
    %v389 = vld [vmem:[#allocation11 + $0x360] sm:$0xff]
    %v390 = vld [vmem:[#allocation11 + $0x368] sm:$0xff]
    %v391 = vld [vmem:[#allocation11 + $0x370] sm:$0xff]
    %v392 = vld [vmem:[#allocation11 + $0x378] sm:$0xff]
    %v393 = vld [vmem:[#allocation11 + $0x380] sm:$0xff]
    %v394 = vld [vmem:[#allocation11 + $0x388] sm:$0xff]
    %v395 = vld [vmem:[#allocation11 + $0x390] sm:$0xff]
    %v396 = vld [vmem:[#allocation11 + $0x398] sm:$0xff]
    %v397 = vld [vmem:[#allocation11 + $0x3a0] sm:$0xff]
    %v398 = vld [vmem:[#allocation11 + $0x3a8] sm:$0xff]
    %v399 = vld [vmem:[#allocation11 + $0x3b0] sm:$0xff]
    %v400 = vld [vmem:[#allocation11 + $0x3b8] sm:$0xff]
    %v401 = vld [vmem:[#allocation11 + $0x3c0] sm:$0xff]
    %v402 = vld [vmem:[#allocation11 + $0x3c8] sm:$0xff]
    %v403 = vld [vmem:[#allocation11 + $0x3d0] sm:$0xff]
    %v404 = vld [vmem:[#allocation11 + $0x3d8] sm:$0xff]
    %v405 = vld [vmem:[#allocation11 + $0x3e0] sm:$0xff]
    %v406 = vld [vmem:[#allocation11 + $0x3e8] sm:$0xff]
    %v407 = vld [vmem:[#allocation11 + $0x3f0] sm:$0xff]
    %v408 = vld [vmem:[#allocation11 + $0x3f8] sm:$0xff]
    %v409 = vld [vmem:[#allocation11 + $0x400] sm:$0xff]
    %v410 = vld [vmem:[#allocation11 + $0x408] sm:$0xff]
    %v411 = vld [vmem:[#allocation11 + $0x410] sm:$0xff]
    %v412 = vld [vmem:[#allocation11 + $0x418] sm:$0xff]
    %v413 = vld [vmem:[#allocation11 + $0x420] sm:$0xff]
    %v414 = vld [vmem:[#allocation11 + $0x428] sm:$0xff]
    %v415 = vld [vmem:[#allocation11 + $0x430] sm:$0xff]
    %v416 = vld [vmem:[#allocation11 + $0x438] sm:$0xff]
    %v417 = vld [vmem:[#allocation11 + $0x440] sm:$0xff]
    %v418 = vld [vmem:[#allocation11 + $0x448] sm:$0xff]
    %v419 = vld [vmem:[#allocation11 + $0x450] sm:$0xff]
    %v420 = vld [vmem:[#allocation11 + $0x458] sm:$0xff]
    %v421 = vld [vmem:[#allocation11 + $0x460] sm:$0xff]
    %v422 = vld [vmem:[#allocation11 + $0x468] sm:$0xff]
    %v423 = vld [vmem:[#allocation11 + $0x470] sm:$0xff]
    %v424 = vld [vmem:[#allocation11 + $0x478] sm:$0xff]
    %v425 = vld [vmem:[#allocation11 + $0x480] sm:$0xff]
    %v426 = vld [vmem:[#allocation11 + $0x488] sm:$0xff]
    %v427 = vld [vmem:[#allocation11 + $0x490] sm:$0xff]
    %v428 = vld [vmem:[#allocation11 + $0x498] sm:$0xff]
    %v429 = vld [vmem:[#allocation11 + $0x4a0] sm:$0xff]
    %v430 = vld [vmem:[#allocation11 + $0x4a8] sm:$0xff]
    %v431 = vld [vmem:[#allocation11 + $0x4b0] sm:$0xff]
    %v432 = vld [vmem:[#allocation11 + $0x4b8] sm:$0xff]
    %v433 = vld [vmem:[#allocation11 + $0x4c0] sm:$0xff]
    %v434 = vld [vmem:[#allocation11 + $0x4c8] sm:$0xff]
    %v435 = vld [vmem:[#allocation11 + $0x4d0] sm:$0xff]
    %v436 = vld [vmem:[#allocation11 + $0x4d8] sm:$0xff]
    %v437 = vld [vmem:[#allocation11 + $0x4e0] sm:$0xff]
    %v438 = vld [vmem:[#allocation11 + $0x4e8] sm:$0xff]
    %v439 = vld [vmem:[#allocation11 + $0x4f0] sm:$0xff]
    %v440 = vld [vmem:[#allocation11 + $0x4f8] sm:$0xff]
    %v441 = vld [vmem:[#allocation11 + $0x500] sm:$0xff]
    %v442 = vld [vmem:[#allocation11 + $0x508] sm:$0xff]
    %v443 = vld [vmem:[#allocation11 + $0x510] sm:$0xff]
    %v444 = vld [vmem:[#allocation11 + $0x518] sm:$0xff]
    %v445 = vld [vmem:[#allocation11 + $0x520] sm:$0xff]
    %v446 = vld [vmem:[#allocation11 + $0x528] sm:$0xff]
    %v447 = vld [vmem:[#allocation11 + $0x530] sm:$0xff]
    %v448 = vld [vmem:[#allocation11 + $0x538] sm:$0xff]
    %v449 = vld [vmem:[#allocation11 + $0x540] sm:$0xff]
    %v450 = vld [vmem:[#allocation11 + $0x548] sm:$0xff]
    %v451 = vld [vmem:[#allocation11 + $0x550] sm:$0xff]
    %v452 = vld [vmem:[#allocation11 + $0x558] sm:$0xff]
    %v453 = vld [vmem:[#allocation11 + $0x560] sm:$0xff]
    %v454 = vld [vmem:[#allocation11 + $0x568] sm:$0xff]
    %v455 = vld [vmem:[#allocation11 + $0x570] sm:$0xff]
    %v456 = vld [vmem:[#allocation11 + $0x578] sm:$0xff]
    %v457 = vld [vmem:[#allocation11 + $0x580] sm:$0xff]
    %v458 = vld [vmem:[#allocation11 + $0x588] sm:$0xff]
    %v459 = vld [vmem:[#allocation11 + $0x590] sm:$0xff]
    %v460 = vld [vmem:[#allocation11 + $0x598] sm:$0xff]
    %v461 = vld [vmem:[#allocation11 + $0x5a0] sm:$0xff]
    %v462 = vld [vmem:[#allocation11 + $0x5a8] sm:$0xff]
    %v463 = vld [vmem:[#allocation11 + $0x5b0] sm:$0xff]
    %v464 = vld [vmem:[#allocation11 + $0x5b8] sm:$0xff]
    %v465 = vld [vmem:[#allocation11 + $0x5c0] sm:$0xff]
    %v466 = vld [vmem:[#allocation11 + $0x5c8] sm:$0xff]
    %v467 = vld [vmem:[#allocation11 + $0x5d0] sm:$0xff]
    %v468 = vld [vmem:[#allocation11 + $0x5d8] sm:$0xff]
    %v469 = vld [vmem:[#allocation11 + $0x5e0] sm:$0xff]
    %v470 = vld [vmem:[#allocation11 + $0x5e8] sm:$0xff]
    %v471 = vld [vmem:[#allocation11 + $0x5f0] sm:$0xff]
    %v472 = vld [vmem:[#allocation11 + $0x5f8] sm:$0xff]
    %v473 = vld [vmem:[#allocation11 + $0x600] sm:$0xff]
    %v474 = vld [vmem:[#allocation11 + $0x608] sm:$0xff]
    %v475 = vld [vmem:[#allocation11 + $0x610] sm:$0xff]
    %v476 = vld [vmem:[#allocation11 + $0x618] sm:$0xff]
    %v477 = vld [vmem:[#allocation11 + $0x620] sm:$0xff]
    %v478 = vld [vmem:[#allocation11 + $0x628] sm:$0xff]
    %v479 = vld [vmem:[#allocation11 + $0x630] sm:$0xff]
    %v480 = vld [vmem:[#allocation11 + $0x638] sm:$0xff]
    %v481 = vld [vmem:[#allocation11 + $0x640] sm:$0xff]
    %v482 = vld [vmem:[#allocation11 + $0x648] sm:$0xff]
    %v483 = vld [vmem:[#allocation11 + $0x650] sm:$0xff]
    %v484 = vld [vmem:[#allocation11 + $0x658] sm:$0xff]
    %v485 = vld [vmem:[#allocation11 + $0x660] sm:$0xff]
    %v486 = vld [vmem:[#allocation11 + $0x668] sm:$0xff]
    %v487 = vld [vmem:[#allocation11 + $0x670] sm:$0xff]
    %v488 = vld [vmem:[#allocation11 + $0x678] sm:$0xff]
    %v489 = vld [vmem:[#allocation11 + $0x680] sm:$0xff]
    %v490 = vld [vmem:[#allocation11 + $0x688] sm:$0xff]
    %v491 = vld [vmem:[#allocation11 + $0x690] sm:$0xff]
    %v492 = vld [vmem:[#allocation11 + $0x698] sm:$0xff]
    %v493 = vld [vmem:[#allocation11 + $0x6a0] sm:$0xff]
    %v494 = vld [vmem:[#allocation11 + $0x6a8] sm:$0xff]
    %v495 = vld [vmem:[#allocation11 + $0x6b0] sm:$0xff]
    %v496 = vld [vmem:[#allocation11 + $0x6b8] sm:$0xff]
    %v497 = vld [vmem:[#allocation11 + $0x6c0] sm:$0xff]
    %v498 = vld [vmem:[#allocation11 + $0x6c8] sm:$0xff]
    %v499 = vld [vmem:[#allocation11 + $0x6d0] sm:$0xff]
    %v500 = vld [vmem:[#allocation11 + $0x6d8] sm:$0xff]
    %v501 = vld [vmem:[#allocation11 + $0x6e0] sm:$0xff]
    %v502 = vld [vmem:[#allocation11 + $0x6e8] sm:$0xff]
    %v503 = vld [vmem:[#allocation11 + $0x6f0] sm:$0xff]
    %v504 = vld [vmem:[#allocation11 + $0x6f8] sm:$0xff]
    %v505 = vld [vmem:[#allocation11 + $0x700] sm:$0xff]
    %v506 = vld [vmem:[#allocation11 + $0x708] sm:$0xff]
    %v507 = vld [vmem:[#allocation11 + $0x710] sm:$0xff]
    %v508 = vld [vmem:[#allocation11 + $0x718] sm:$0xff]
    %v509 = vld [vmem:[#allocation11 + $0x720] sm:$0xff]
    %v510 = vld [vmem:[#allocation11 + $0x728] sm:$0xff]
    %v511 = vld [vmem:[#allocation11 + $0x730] sm:$0xff]
    %v512 = vld [vmem:[#allocation11 + $0x738] sm:$0xff]
    %v513 = vld [vmem:[#allocation11 + $0x740] sm:$0xff]
    %v514 = vld [vmem:[#allocation11 + $0x748] sm:$0xff]
    %v515 = vld [vmem:[#allocation11 + $0x750] sm:$0xff]
    %v516 = vld [vmem:[#allocation11 + $0x758] sm:$0xff]
    %v517 = vld [vmem:[#allocation11 + $0x760] sm:$0xff]
    %v518 = vld [vmem:[#allocation11 + $0x768] sm:$0xff]
    %v519 = vld [vmem:[#allocation11 + $0x770] sm:$0xff]
    %v520 = vld [vmem:[#allocation11 + $0x778] sm:$0xff]
    %v521 = vld [vmem:[#allocation11 + $0x780] sm:$0xff]
    %v522 = vld [vmem:[#allocation11 + $0x788] sm:$0xff]
    %v523 = vld [vmem:[#allocation11 + $0x790] sm:$0xff]
    %v524 = vld [vmem:[#allocation11 + $0x798] sm:$0xff]
    %v525 = vld [vmem:[#allocation11 + $0x7a0] sm:$0xff]
    %v526 = vld [vmem:[#allocation11 + $0x7a8] sm:$0xff]
    %v527 = vld [vmem:[#allocation11 + $0x7b0] sm:$0xff]
    %v528 = vld [vmem:[#allocation11 + $0x7b8] sm:$0xff]
    %v529 = vld [vmem:[#allocation11 + $0x7c0] sm:$0xff]
    %v530 = vld [vmem:[#allocation11 + $0x7c8] sm:$0xff]
    %v531 = vld [vmem:[#allocation11 + $0x7d0] sm:$0xff]
    %v532 = vld [vmem:[#allocation11 + $0x7d8] sm:$0xff]
    %v533 = vld [vmem:[#allocation11 + $0x7e0] sm:$0xff]
    %v534 = vld [vmem:[#allocation11 + $0x7e8] sm:$0xff]
    %v535 = vld [vmem:[#allocation11 + $0x7f0] sm:$0xff]
    %v536 = vld [vmem:[#allocation11 + $0x7f8] sm:$0xff]
    %v537 = vld [vmem:[#allocation11 + $0x800] sm:$0xff]
    %v538 = vld [vmem:[#allocation11 + $0x808] sm:$0xff]
    %v539 = vld [vmem:[#allocation11 + $0x810] sm:$0xff]
    %v540 = vld [vmem:[#allocation11 + $0x818] sm:$0xff]
    %v541 = vld [vmem:[#allocation11 + $0x820] sm:$0xff]
    %v542 = vld [vmem:[#allocation11 + $0x828] sm:$0xff]
    %v543 = vld [vmem:[#allocation11 + $0x830] sm:$0xff]
    %v544 = vld [vmem:[#allocation11 + $0x838] sm:$0xff]
    %v545 = vld [vmem:[#allocation11 + $0x840] sm:$0xff]
    %v546 = vld [vmem:[#allocation11 + $0x848] sm:$0xff]
    %v547 = vld [vmem:[#allocation11 + $0x850] sm:$0xff]
    %v548 = vld [vmem:[#allocation11 + $0x858] sm:$0xff]
    %v549 = vld [vmem:[#allocation11 + $0x860] sm:$0xff]
    %v550 = vld [vmem:[#allocation11 + $0x868] sm:$0xff]
    %v551 = vld [vmem:[#allocation11 + $0x870] sm:$0xff]
    %v552 = vld [vmem:[#allocation11 + $0x878] sm:$0xff]
    %v553 = vld [vmem:[#allocation11 + $0x880] sm:$0xff]
    %v554 = vld [vmem:[#allocation11 + $0x888] sm:$0xff]
    %v555 = vld [vmem:[#allocation11 + $0x890] sm:$0xff]
    %v556 = vld [vmem:[#allocation11 + $0x898] sm:$0xff]
    %v557 = vld [vmem:[#allocation11 + $0x8a0] sm:$0xff]
    %v558 = vld [vmem:[#allocation11 + $0x8a8] sm:$0xff]
    %v559 = vld [vmem:[#allocation11 + $0x8b0] sm:$0xff]
    %v560 = vld [vmem:[#allocation11 + $0x8b8] sm:$0xff]
    %v561 = vld [vmem:[#allocation11 + $0x8c0] sm:$0xff]
    %v562 = vld [vmem:[#allocation11 + $0x8c8] sm:$0xff]
    %v563 = vld [vmem:[#allocation11 + $0x8d0] sm:$0xff]
    %v564 = vld [vmem:[#allocation11 + $0x8d8] sm:$0xff]
    %v565 = vld [vmem:[#allocation11 + $0x8e0] sm:$0xff]
    %v566 = vld [vmem:[#allocation11 + $0x8e8] sm:$0xff]
    %v567 = vld [vmem:[#allocation11 + $0x8f0] sm:$0xff]
    %v568 = vld [vmem:[#allocation11 + $0x8f8] sm:$0xff]
    %v569 = vld [vmem:[#allocation11 + $0x900] sm:$0xff]
    %v570 = vld [vmem:[#allocation11 + $0x908] sm:$0xff]
    %v571 = vld [vmem:[#allocation11 + $0x910] sm:$0xff]
    %v572 = vld [vmem:[#allocation11 + $0x918] sm:$0xff]
    %v573 = vld [vmem:[#allocation11 + $0x920] sm:$0xff]
    %v574 = vld [vmem:[#allocation11 + $0x928] sm:$0xff]
    %v575 = vld [vmem:[#allocation11 + $0x930] sm:$0xff]
    %v576 = vld [vmem:[#allocation11 + $0x938] sm:$0xff]
    %v577 = vld [vmem:[#allocation11 + $0x940] sm:$0xff]
    %v578 = vld [vmem:[#allocation11 + $0x948] sm:$0xff]
    %v579 = vld [vmem:[#allocation11 + $0x950] sm:$0xff]
    %v580 = vld [vmem:[#allocation11 + $0x958] sm:$0xff]
    %v581 = vld [vmem:[#allocation11 + $0x960] sm:$0xff]
    %v582 = vld [vmem:[#allocation11 + $0x968] sm:$0xff]
    %v583 = vld [vmem:[#allocation11 + $0x970] sm:$0xff]
    %v584 = vld [vmem:[#allocation11 + $0x978] sm:$0xff]
    %v585 = vld [vmem:[#allocation11 + $0x980] sm:$0xff]
    %v586 = vld [vmem:[#allocation11 + $0x988] sm:$0xff]
    %v587 = vld [vmem:[#allocation11 + $0x990] sm:$0xff]
    %v588 = vld [vmem:[#allocation11 + $0x998] sm:$0xff]
    %v589 = vld [vmem:[#allocation11 + $0x9a0] sm:$0xff]
    %v590 = vld [vmem:[#allocation11 + $0x9a8] sm:$0xff]
    %v591 = vld [vmem:[#allocation11 + $0x9b0] sm:$0xff]
    %v592 = vld [vmem:[#allocation11 + $0x9b8] sm:$0xff]
    %v593 = vld [vmem:[#allocation11 + $0x9c0] sm:$0xff]
    %v594 = vld [vmem:[#allocation11 + $0x9c8] sm:$0xff]
    %v595 = vld [vmem:[#allocation11 + $0x9d0] sm:$0xff]
    %v596 = vld [vmem:[#allocation11 + $0x9d8] sm:$0xff]
    %v597 = vld [vmem:[#allocation11 + $0x9e0] sm:$0xff]
    %v598 = vld [vmem:[#allocation11 + $0x9e8] sm:$0xff]
    %v599 = vld [vmem:[#allocation11 + $0x9f0] sm:$0xff]
    %v600 = vld [vmem:[#allocation11 + $0x9f8] sm:$0xff]
    %v601 = vld [vmem:[#allocation14] sm:$0xf]
    %v603 = vlaneseq
    %v604 = vshrl.u32 %v603, 7
    %v605 = vsub.s32 0, %v604
    %v606 = vrot.slane %v601, %v605
    %v607 = vlaneseq
    %v608 = vshrl.u32 %v607, 7
    %v609 = vsub.s32 1, %v608
    %v610 = vrot.slane %v601, %v609
    %v611 = vlaneseq
    %v612 = vshrl.u32 %v611, 7
    %v613 = vsub.s32 2, %v612
    %v614 = vrot.slane %v601, %v613
    %v615 = vlaneseq
    %v616 = vshrl.u32 %v615, 7
    %v617 = vsub.s32 3, %v616
    %v618 = vrot.slane %v601, %v617
    %v943 = vunpack.c.l.b16 %v281
    %v944 = vunpack.c.h.b16 %v281
    %v945 = vunpack.c.l.b16 %v282
    %v946 = vunpack.c.h.b16 %v282
    %v947 = vunpack.c.l.b16 %v283
    %v948 = vunpack.c.h.b16 %v283
    %v949 = vunpack.c.l.b16 %v284
    %v950 = vunpack.c.h.b16 %v284
    %v951 = vunpack.c.l.b16 %v285
    %v952 = vunpack.c.h.b16 %v285
    %v953 = vunpack.c.l.b16 %v286
    %v954 = vunpack.c.h.b16 %v286
    %v955 = vunpack.c.l.b16 %v287
    %v956 = vunpack.c.h.b16 %v287
    %v957 = vunpack.c.l.b16 %v288
    %v958 = vunpack.c.h.b16 %v288
    %v959 = vunpack.c.l.b16 %v289
    %v960 = vunpack.c.h.b16 %v289
    %v961 = vunpack.c.l.b16 %v290
    %v962 = vunpack.c.h.b16 %v290
    %v963 = vunpack.c.l.b16 %v291
    %v964 = vunpack.c.h.b16 %v291
    %v965 = vunpack.c.l.b16 %v292
    %v966 = vunpack.c.h.b16 %v292
    %v967 = vunpack.c.l.b16 %v293
    %v968 = vunpack.c.h.b16 %v293
    %v969 = vunpack.c.l.b16 %v294
    %v970 = vunpack.c.h.b16 %v294
    %v971 = vunpack.c.l.b16 %v295
    %v972 = vunpack.c.h.b16 %v295
    %v973 = vunpack.c.l.b16 %v296
    %v974 = vunpack.c.h.b16 %v296
    %v975 = vunpack.c.l.b16 %v297
    %v976 = vunpack.c.h.b16 %v297
    %v977 = vunpack.c.l.b16 %v298
    %v978 = vunpack.c.h.b16 %v298
    %v979 = vunpack.c.l.b16 %v299
    %v980 = vunpack.c.h.b16 %v299
    %v981 = vunpack.c.l.b16 %v300
    %v982 = vunpack.c.h.b16 %v300
    %v983 = vunpack.c.l.b16 %v301
    %v984 = vunpack.c.h.b16 %v301
    %v985 = vunpack.c.l.b16 %v302
    %v986 = vunpack.c.h.b16 %v302
    %v987 = vunpack.c.l.b16 %v303
    %v988 = vunpack.c.h.b16 %v303
    %v989 = vunpack.c.l.b16 %v304
    %v990 = vunpack.c.h.b16 %v304
    %v991 = vunpack.c.l.b16 %v305
    %v992 = vunpack.c.h.b16 %v305
    %v993 = vunpack.c.l.b16 %v306
    %v994 = vunpack.c.h.b16 %v306
    %v995 = vunpack.c.l.b16 %v307
    %v996 = vunpack.c.h.b16 %v307
    %v997 = vunpack.c.l.b16 %v308
    %v998 = vunpack.c.h.b16 %v308
    %v999 = vunpack.c.l.b16 %v309
    %v1000 = vunpack.c.h.b16 %v309
    %v1001 = vunpack.c.l.b16 %v310
    %v1002 = vunpack.c.h.b16 %v310
    %v1003 = vunpack.c.l.b16 %v311
    %v1004 = vunpack.c.h.b16 %v311
    %v1005 = vunpack.c.l.b16 %v312
    %v1006 = vunpack.c.h.b16 %v312
    %v1007 = vunpack.c.l.b16 %v313
    %v1008 = vunpack.c.h.b16 %v313
    %v1009 = vunpack.c.l.b16 %v314
    %v1010 = vunpack.c.h.b16 %v314
    %v1011 = vunpack.c.l.b16 %v315
    %v1012 = vunpack.c.h.b16 %v315
    %v1013 = vunpack.c.l.b16 %v316
    %v1014 = vunpack.c.h.b16 %v316
    %v1015 = vunpack.c.l.b16 %v317
    %v1016 = vunpack.c.h.b16 %v317
    %v1017 = vunpack.c.l.b16 %v318
    %v1018 = vunpack.c.h.b16 %v318
    %v1019 = vunpack.c.l.b16 %v319
    %v1020 = vunpack.c.h.b16 %v319
    %v1021 = vunpack.c.l.b16 %v320
    %v1022 = vunpack.c.h.b16 %v320
    %v1023 = vunpack.c.l.b16 %v321
    %v1024 = vunpack.c.h.b16 %v321
    %v1025 = vunpack.c.l.b16 %v322
    %v1026 = vunpack.c.h.b16 %v322
    %v1027 = vunpack.c.l.b16 %v323
    %v1028 = vunpack.c.h.b16 %v323
    %v1029 = vunpack.c.l.b16 %v324
    %v1030 = vunpack.c.h.b16 %v324
    %v1031 = vunpack.c.l.b16 %v325
    %v1032 = vunpack.c.h.b16 %v325
    %v1033 = vunpack.c.l.b16 %v326
    %v1034 = vunpack.c.h.b16 %v326
    %v1035 = vunpack.c.l.b16 %v327
    %v1036 = vunpack.c.h.b16 %v327
    %v1037 = vunpack.c.l.b16 %v328
    %v1038 = vunpack.c.h.b16 %v328
    %v1039 = vunpack.c.l.b16 %v329
    %v1040 = vunpack.c.h.b16 %v329
    %v1041 = vunpack.c.l.b16 %v330
    %v1042 = vunpack.c.h.b16 %v330
    %v1043 = vunpack.c.l.b16 %v331
    %v1044 = vunpack.c.h.b16 %v331
    %v1045 = vunpack.c.l.b16 %v332
    %v1046 = vunpack.c.h.b16 %v332
    %v1047 = vunpack.c.l.b16 %v333
    %v1048 = vunpack.c.h.b16 %v333
    %v1049 = vunpack.c.l.b16 %v334
    %v1050 = vunpack.c.h.b16 %v334
    %v1051 = vunpack.c.l.b16 %v335
    %v1052 = vunpack.c.h.b16 %v335
    %v1053 = vunpack.c.l.b16 %v336
    %v1054 = vunpack.c.h.b16 %v336
    %v1055 = vunpack.c.l.b16 %v337
    %v1056 = vunpack.c.h.b16 %v337
    %v1057 = vunpack.c.l.b16 %v338
    %v1058 = vunpack.c.h.b16 %v338
    %v1059 = vunpack.c.l.b16 %v339
    %v1060 = vunpack.c.h.b16 %v339
    %v1061 = vunpack.c.l.b16 %v340
    %v1062 = vunpack.c.h.b16 %v340
    %v1063 = vunpack.c.l.b16 %v341
    %v1064 = vunpack.c.h.b16 %v341
    %v1065 = vunpack.c.l.b16 %v342
    %v1066 = vunpack.c.h.b16 %v342
    %v1067 = vunpack.c.l.b16 %v343
    %v1068 = vunpack.c.h.b16 %v343
    %v1069 = vunpack.c.l.b16 %v344
    %v1070 = vunpack.c.h.b16 %v344
    %v1071 = vunpack.c.l.b16 %v345
    %v1072 = vunpack.c.h.b16 %v345
    %v1073 = vunpack.c.l.b16 %v346
    %v1074 = vunpack.c.h.b16 %v346
    %v1075 = vunpack.c.l.b16 %v347
    %v1076 = vunpack.c.h.b16 %v347
    %v1077 = vunpack.c.l.b16 %v348
    %v1078 = vunpack.c.h.b16 %v348
    %v1079 = vunpack.c.l.b16 %v349
    %v1080 = vunpack.c.h.b16 %v349
    %v1081 = vunpack.c.l.b16 %v350
    %v1082 = vunpack.c.h.b16 %v350
    %v1083 = vunpack.c.l.b16 %v351
    %v1084 = vunpack.c.h.b16 %v351
    %v1085 = vunpack.c.l.b16 %v352
    %v1086 = vunpack.c.h.b16 %v352
    %v1087 = vunpack.c.l.b16 %v353
    %v1088 = vunpack.c.h.b16 %v353
    %v1089 = vunpack.c.l.b16 %v354
    %v1090 = vunpack.c.h.b16 %v354
    %v1091 = vunpack.c.l.b16 %v355
    %v1092 = vunpack.c.h.b16 %v355
    %v1093 = vunpack.c.l.b16 %v356
    %v1094 = vunpack.c.h.b16 %v356
    %v1095 = vunpack.c.l.b16 %v357
    %v1096 = vunpack.c.h.b16 %v357
    %v1097 = vunpack.c.l.b16 %v358
    %v1098 = vunpack.c.h.b16 %v358
    %v1099 = vunpack.c.l.b16 %v359
    %v1100 = vunpack.c.h.b16 %v359
    %v1101 = vunpack.c.l.b16 %v360
    %v1102 = vunpack.c.h.b16 %v360
    %v1103 = vunpack.c.l.b16 %v361
    %v1104 = vunpack.c.h.b16 %v361
    %v1105 = vunpack.c.l.b16 %v362
    %v1106 = vunpack.c.h.b16 %v362
    %v1107 = vunpack.c.l.b16 %v363
    %v1108 = vunpack.c.h.b16 %v363
    %v1109 = vunpack.c.l.b16 %v364
    %v1110 = vunpack.c.h.b16 %v364
    %v1111 = vunpack.c.l.b16 %v365
    %v1112 = vunpack.c.h.b16 %v365
    %v1113 = vunpack.c.l.b16 %v366
    %v1114 = vunpack.c.h.b16 %v366
    %v1115 = vunpack.c.l.b16 %v367
    %v1116 = vunpack.c.h.b16 %v367
    %v1117 = vunpack.c.l.b16 %v368
    %v1118 = vunpack.c.h.b16 %v368
    %v1119 = vunpack.c.l.b16 %v369
    %v1120 = vunpack.c.h.b16 %v369
    %v1121 = vunpack.c.l.b16 %v370
    %v1122 = vunpack.c.h.b16 %v370
    %v1123 = vunpack.c.l.b16 %v371
    %v1124 = vunpack.c.h.b16 %v371
    %v1125 = vunpack.c.l.b16 %v372
    %v1126 = vunpack.c.h.b16 %v372
    %v1127 = vunpack.c.l.b16 %v373
    %v1128 = vunpack.c.h.b16 %v373
    %v1129 = vunpack.c.l.b16 %v374
    %v1130 = vunpack.c.h.b16 %v374
    %v1131 = vunpack.c.l.b16 %v375
    %v1132 = vunpack.c.h.b16 %v375
    %v1133 = vunpack.c.l.b16 %v376
    %v1134 = vunpack.c.h.b16 %v376
    %v1135 = vunpack.c.l.b16 %v377
    %v1136 = vunpack.c.h.b16 %v377
    %v1137 = vunpack.c.l.b16 %v378
    %v1138 = vunpack.c.h.b16 %v378
    %v1139 = vunpack.c.l.b16 %v379
    %v1140 = vunpack.c.h.b16 %v379
    %v1141 = vunpack.c.l.b16 %v380
    %v1142 = vunpack.c.h.b16 %v380
    %v1143 = vunpack.c.l.b16 %v381
    %v1144 = vunpack.c.h.b16 %v381
    %v1145 = vunpack.c.l.b16 %v382
    %v1146 = vunpack.c.h.b16 %v382
    %v1147 = vunpack.c.l.b16 %v383
    %v1148 = vunpack.c.h.b16 %v383
    %v1149 = vunpack.c.l.b16 %v384
    %v1150 = vunpack.c.h.b16 %v384
    %v1151 = vunpack.c.l.b16 %v385
    %v1152 = vunpack.c.h.b16 %v385
    %v1153 = vunpack.c.l.b16 %v386
    %v1154 = vunpack.c.h.b16 %v386
    %v1155 = vunpack.c.l.b16 %v387
    %v1156 = vunpack.c.h.b16 %v387
    %v1157 = vunpack.c.l.b16 %v388
    %v1158 = vunpack.c.h.b16 %v388
    %v1159 = vunpack.c.l.b16 %v389
    %v1160 = vunpack.c.h.b16 %v389
    %v1161 = vunpack.c.l.b16 %v390
    %v1162 = vunpack.c.h.b16 %v390
    %v1163 = vunpack.c.l.b16 %v391
    %v1164 = vunpack.c.h.b16 %v391
    %v1165 = vunpack.c.l.b16 %v392
    %v1166 = vunpack.c.h.b16 %v392
    %v1167 = vunpack.c.l.b16 %v393
    %v1168 = vunpack.c.h.b16 %v393
    %v1169 = vunpack.c.l.b16 %v394
    %v1170 = vunpack.c.h.b16 %v394
    %v1171 = vunpack.c.l.b16 %v395
    %v1172 = vunpack.c.h.b16 %v395
    %v1173 = vunpack.c.l.b16 %v396
    %v1174 = vunpack.c.h.b16 %v396
    %v1175 = vunpack.c.l.b16 %v397
    %v1176 = vunpack.c.h.b16 %v397
    %v1177 = vunpack.c.l.b16 %v398
    %v1178 = vunpack.c.h.b16 %v398
    %v1179 = vunpack.c.l.b16 %v399
    %v1180 = vunpack.c.h.b16 %v399
    %v1181 = vunpack.c.l.b16 %v400
    %v1182 = vunpack.c.h.b16 %v400
    %v1183 = vunpack.c.l.b16 %v401
    %v1184 = vunpack.c.h.b16 %v401
    %v1185 = vunpack.c.l.b16 %v402
    %v1186 = vunpack.c.h.b16 %v402
    %v1187 = vunpack.c.l.b16 %v403
    %v1188 = vunpack.c.h.b16 %v403
    %v1189 = vunpack.c.l.b16 %v404
    %v1190 = vunpack.c.h.b16 %v404
    %v1191 = vunpack.c.l.b16 %v405
    %v1192 = vunpack.c.h.b16 %v405
    %v1193 = vunpack.c.l.b16 %v406
    %v1194 = vunpack.c.h.b16 %v406
    %v1195 = vunpack.c.l.b16 %v407
    %v1196 = vunpack.c.h.b16 %v407
    %v1197 = vunpack.c.l.b16 %v408
    %v1198 = vunpack.c.h.b16 %v408
    %v1199 = vunpack.c.l.b16 %v409
    %v1200 = vunpack.c.h.b16 %v409
    %v1201 = vunpack.c.l.b16 %v410
    %v1202 = vunpack.c.h.b16 %v410
    %v1203 = vunpack.c.l.b16 %v411
    %v1204 = vunpack.c.h.b16 %v411
    %v1205 = vunpack.c.l.b16 %v412
    %v1206 = vunpack.c.h.b16 %v412
    %v1207 = vunpack.c.l.b16 %v413
    %v1208 = vunpack.c.h.b16 %v413
    %v1209 = vunpack.c.l.b16 %v414
    %v1210 = vunpack.c.h.b16 %v414
    %v1211 = vunpack.c.l.b16 %v415
    %v1212 = vunpack.c.h.b16 %v415
    %v1213 = vunpack.c.l.b16 %v416
    %v1214 = vunpack.c.h.b16 %v416
    %v1215 = vunpack.c.l.b16 %v417
    %v1216 = vunpack.c.h.b16 %v417
    %v1217 = vunpack.c.l.b16 %v418
    %v1218 = vunpack.c.h.b16 %v418
    %v1219 = vunpack.c.l.b16 %v419
    %v1220 = vunpack.c.h.b16 %v419
    %v1221 = vunpack.c.l.b16 %v420
    %v1222 = vunpack.c.h.b16 %v420
    %v1223 = vunpack.c.l.b16 %v421
    %v1224 = vunpack.c.h.b16 %v421
    %v1225 = vunpack.c.l.b16 %v422
    %v1226 = vunpack.c.h.b16 %v422
    %v1227 = vunpack.c.l.b16 %v423
    %v1228 = vunpack.c.h.b16 %v423
    %v1229 = vunpack.c.l.b16 %v424
    %v1230 = vunpack.c.h.b16 %v424
    %v1231 = vunpack.c.l.b16 %v425
    %v1232 = vunpack.c.h.b16 %v425
    %v1233 = vunpack.c.l.b16 %v426
    %v1234 = vunpack.c.h.b16 %v426
    %v1235 = vunpack.c.l.b16 %v427
    %v1236 = vunpack.c.h.b16 %v427
    %v1237 = vunpack.c.l.b16 %v428
    %v1238 = vunpack.c.h.b16 %v428
    %v1239 = vunpack.c.l.b16 %v429
    %v1240 = vunpack.c.h.b16 %v429
    %v1241 = vunpack.c.l.b16 %v430
    %v1242 = vunpack.c.h.b16 %v430
    %v1243 = vunpack.c.l.b16 %v431
    %v1244 = vunpack.c.h.b16 %v431
    %v1245 = vunpack.c.l.b16 %v432
    %v1246 = vunpack.c.h.b16 %v432
    %v1247 = vunpack.c.l.b16 %v433
    %v1248 = vunpack.c.h.b16 %v433
    %v1249 = vunpack.c.l.b16 %v434
    %v1250 = vunpack.c.h.b16 %v434
    %v1251 = vunpack.c.l.b16 %v435
    %v1252 = vunpack.c.h.b16 %v435
    %v1253 = vunpack.c.l.b16 %v436
    %v1254 = vunpack.c.h.b16 %v436
    %v1255 = vunpack.c.l.b16 %v437
    %v1256 = vunpack.c.h.b16 %v437
    %v1257 = vunpack.c.l.b16 %v438
    %v1258 = vunpack.c.h.b16 %v438
    %v1259 = vunpack.c.l.b16 %v439
    %v1260 = vunpack.c.h.b16 %v439
    %v1261 = vunpack.c.l.b16 %v440
    %v1262 = vunpack.c.h.b16 %v440
    %v1263 = vunpack.c.l.b16 %v441
    %v1264 = vunpack.c.h.b16 %v441
    %v1265 = vunpack.c.l.b16 %v442
    %v1266 = vunpack.c.h.b16 %v442
    %v1267 = vunpack.c.l.b16 %v443
    %v1268 = vunpack.c.h.b16 %v443
    %v1269 = vunpack.c.l.b16 %v444
    %v1270 = vunpack.c.h.b16 %v444
    %v1271 = vunpack.c.l.b16 %v445
    %v1272 = vunpack.c.h.b16 %v445
    %v1273 = vunpack.c.l.b16 %v446
    %v1274 = vunpack.c.h.b16 %v446
    %v1275 = vunpack.c.l.b16 %v447
    %v1276 = vunpack.c.h.b16 %v447
    %v1277 = vunpack.c.l.b16 %v448
    %v1278 = vunpack.c.h.b16 %v448
    %v1279 = vunpack.c.l.b16 %v449
    %v1280 = vunpack.c.h.b16 %v449
    %v1281 = vunpack.c.l.b16 %v450
    %v1282 = vunpack.c.h.b16 %v450
    %v1283 = vunpack.c.l.b16 %v451
    %v1284 = vunpack.c.h.b16 %v451
    %v1285 = vunpack.c.l.b16 %v452
    %v1286 = vunpack.c.h.b16 %v452
    %v1287 = vunpack.c.l.b16 %v453
    %v1288 = vunpack.c.h.b16 %v453
    %v1289 = vunpack.c.l.b16 %v454
    %v1290 = vunpack.c.h.b16 %v454
    %v1291 = vunpack.c.l.b16 %v455
    %v1292 = vunpack.c.h.b16 %v455
    %v1293 = vunpack.c.l.b16 %v456
    %v1294 = vunpack.c.h.b16 %v456
    %v1295 = vunpack.c.l.b16 %v457
    %v1296 = vunpack.c.h.b16 %v457
    %v1297 = vunpack.c.l.b16 %v458
    %v1298 = vunpack.c.h.b16 %v458
    %v1299 = vunpack.c.l.b16 %v459
    %v1300 = vunpack.c.h.b16 %v459
    %v1301 = vunpack.c.l.b16 %v460
    %v1302 = vunpack.c.h.b16 %v460
    %v1303 = vunpack.c.l.b16 %v461
    %v1304 = vunpack.c.h.b16 %v461
    %v1305 = vunpack.c.l.b16 %v462
    %v1306 = vunpack.c.h.b16 %v462
    %v1307 = vunpack.c.l.b16 %v463
    %v1308 = vunpack.c.h.b16 %v463
    %v1309 = vunpack.c.l.b16 %v464
    %v1310 = vunpack.c.h.b16 %v464
    %v1311 = vunpack.c.l.b16 %v465
    %v1312 = vunpack.c.h.b16 %v465
    %v1313 = vunpack.c.l.b16 %v466
    %v1314 = vunpack.c.h.b16 %v466
    %v1315 = vunpack.c.l.b16 %v467
    %v1316 = vunpack.c.h.b16 %v467
    %v1317 = vunpack.c.l.b16 %v468
    %v1318 = vunpack.c.h.b16 %v468
    %v1319 = vunpack.c.l.b16 %v469
    %v1320 = vunpack.c.h.b16 %v469
    %v1321 = vunpack.c.l.b16 %v470
    %v1322 = vunpack.c.h.b16 %v470
    %v1323 = vunpack.c.l.b16 %v471
    %v1324 = vunpack.c.h.b16 %v471
    %v1325 = vunpack.c.l.b16 %v472
    %v1326 = vunpack.c.h.b16 %v472
    %v1327 = vunpack.c.l.b16 %v473
    %v1328 = vunpack.c.h.b16 %v473
    %v1329 = vunpack.c.l.b16 %v474
    %v1330 = vunpack.c.h.b16 %v474
    %v1331 = vunpack.c.l.b16 %v475
    %v1332 = vunpack.c.h.b16 %v475
    %v1333 = vunpack.c.l.b16 %v476
    %v1334 = vunpack.c.h.b16 %v476
    %v1335 = vunpack.c.l.b16 %v477
    %v1336 = vunpack.c.h.b16 %v477
    %v1337 = vunpack.c.l.b16 %v478
    %v1338 = vunpack.c.h.b16 %v478
    %v1339 = vunpack.c.l.b16 %v479
    %v1340 = vunpack.c.h.b16 %v479
    %v1341 = vunpack.c.l.b16 %v480
    %v1342 = vunpack.c.h.b16 %v480
    %v1343 = vunpack.c.l.b16 %v481
    %v1344 = vunpack.c.h.b16 %v481
    %v1345 = vunpack.c.l.b16 %v482
    %v1346 = vunpack.c.h.b16 %v482
    %v1347 = vunpack.c.l.b16 %v483
    %v1348 = vunpack.c.h.b16 %v483
    %v1349 = vunpack.c.l.b16 %v484
    %v1350 = vunpack.c.h.b16 %v484
    %v1351 = vunpack.c.l.b16 %v485
    %v1352 = vunpack.c.h.b16 %v485
    %v1353 = vunpack.c.l.b16 %v486
    %v1354 = vunpack.c.h.b16 %v486
    %v1355 = vunpack.c.l.b16 %v487
    %v1356 = vunpack.c.h.b16 %v487
    %v1357 = vunpack.c.l.b16 %v488
    %v1358 = vunpack.c.h.b16 %v488
    %v1359 = vunpack.c.l.b16 %v489
    %v1360 = vunpack.c.h.b16 %v489
    %v1361 = vunpack.c.l.b16 %v490
    %v1362 = vunpack.c.h.b16 %v490
    %v1363 = vunpack.c.l.b16 %v491
    %v1364 = vunpack.c.h.b16 %v491
    %v1365 = vunpack.c.l.b16 %v492
    %v1366 = vunpack.c.h.b16 %v492
    %v1367 = vunpack.c.l.b16 %v493
    %v1368 = vunpack.c.h.b16 %v493
    %v1369 = vunpack.c.l.b16 %v494
    %v1370 = vunpack.c.h.b16 %v494
    %v1371 = vunpack.c.l.b16 %v495
    %v1372 = vunpack.c.h.b16 %v495
    %v1373 = vunpack.c.l.b16 %v496
    %v1374 = vunpack.c.h.b16 %v496
    %v1375 = vunpack.c.l.b16 %v497
    %v1376 = vunpack.c.h.b16 %v497
    %v1377 = vunpack.c.l.b16 %v498
    %v1378 = vunpack.c.h.b16 %v498
    %v1379 = vunpack.c.l.b16 %v499
    %v1380 = vunpack.c.h.b16 %v499
    %v1381 = vunpack.c.l.b16 %v500
    %v1382 = vunpack.c.h.b16 %v500
    %v1383 = vunpack.c.l.b16 %v501
    %v1384 = vunpack.c.h.b16 %v501
    %v1385 = vunpack.c.l.b16 %v502
    %v1386 = vunpack.c.h.b16 %v502
    %v1387 = vunpack.c.l.b16 %v503
    %v1388 = vunpack.c.h.b16 %v503
    %v1389 = vunpack.c.l.b16 %v504
    %v1390 = vunpack.c.h.b16 %v504
    %v1391 = vunpack.c.l.b16 %v505
    %v1392 = vunpack.c.h.b16 %v505
    %v1393 = vunpack.c.l.b16 %v506
    %v1394 = vunpack.c.h.b16 %v506
    %v1395 = vunpack.c.l.b16 %v507
    %v1396 = vunpack.c.h.b16 %v507
    %v1397 = vunpack.c.l.b16 %v508
    %v1398 = vunpack.c.h.b16 %v508
    %v1399 = vunpack.c.l.b16 %v509
    %v1400 = vunpack.c.h.b16 %v509
    %v1401 = vunpack.c.l.b16 %v510
    %v1402 = vunpack.c.h.b16 %v510
    %v1403 = vunpack.c.l.b16 %v511
    %v1404 = vunpack.c.h.b16 %v511
    %v1405 = vunpack.c.l.b16 %v512
    %v1406 = vunpack.c.h.b16 %v512
    %v1407 = vunpack.c.l.b16 %v513
    %v1408 = vunpack.c.h.b16 %v513
    %v1409 = vunpack.c.l.b16 %v514
    %v1410 = vunpack.c.h.b16 %v514
    %v1411 = vunpack.c.l.b16 %v515
    %v1412 = vunpack.c.h.b16 %v515
    %v1413 = vunpack.c.l.b16 %v516
    %v1414 = vunpack.c.h.b16 %v516
    %v1415 = vunpack.c.l.b16 %v517
    %v1416 = vunpack.c.h.b16 %v517
    %v1417 = vunpack.c.l.b16 %v518
    %v1418 = vunpack.c.h.b16 %v518
    %v1419 = vunpack.c.l.b16 %v519
    %v1420 = vunpack.c.h.b16 %v519
    %v1421 = vunpack.c.l.b16 %v520
    %v1422 = vunpack.c.h.b16 %v520
    %v1423 = vunpack.c.l.b16 %v521
    %v1424 = vunpack.c.h.b16 %v521
    %v1425 = vunpack.c.l.b16 %v522
    %v1426 = vunpack.c.h.b16 %v522
    %v1427 = vunpack.c.l.b16 %v523
    %v1428 = vunpack.c.h.b16 %v523
    %v1429 = vunpack.c.l.b16 %v524
    %v1430 = vunpack.c.h.b16 %v524
    %v1431 = vunpack.c.l.b16 %v525
    %v1432 = vunpack.c.h.b16 %v525
    %v1433 = vunpack.c.l.b16 %v526
    %v1434 = vunpack.c.h.b16 %v526
    %v1435 = vunpack.c.l.b16 %v527
    %v1436 = vunpack.c.h.b16 %v527
    %v1437 = vunpack.c.l.b16 %v528
    %v1438 = vunpack.c.h.b16 %v528
    %v1439 = vunpack.c.l.b16 %v529
    %v1440 = vunpack.c.h.b16 %v529
    %v1441 = vunpack.c.l.b16 %v530
    %v1442 = vunpack.c.h.b16 %v530
    %v1443 = vunpack.c.l.b16 %v531
    %v1444 = vunpack.c.h.b16 %v531
    %v1445 = vunpack.c.l.b16 %v532
    %v1446 = vunpack.c.h.b16 %v532
    %v1447 = vunpack.c.l.b16 %v533
    %v1448 = vunpack.c.h.b16 %v533
    %v1449 = vunpack.c.l.b16 %v534
    %v1450 = vunpack.c.h.b16 %v534
    %v1451 = vunpack.c.l.b16 %v535
    %v1452 = vunpack.c.h.b16 %v535
    %v1453 = vunpack.c.l.b16 %v536
    %v1454 = vunpack.c.h.b16 %v536
    %v1455 = vunpack.c.l.b16 %v537
    %v1456 = vunpack.c.h.b16 %v537
    %v1457 = vunpack.c.l.b16 %v538
    %v1458 = vunpack.c.h.b16 %v538
    %v1459 = vunpack.c.l.b16 %v539
    %v1460 = vunpack.c.h.b16 %v539
    %v1461 = vunpack.c.l.b16 %v540
    %v1462 = vunpack.c.h.b16 %v540
    %v1463 = vunpack.c.l.b16 %v541
    %v1464 = vunpack.c.h.b16 %v541
    %v1465 = vunpack.c.l.b16 %v542
    %v1466 = vunpack.c.h.b16 %v542
    %v1467 = vunpack.c.l.b16 %v543
    %v1468 = vunpack.c.h.b16 %v543
    %v1469 = vunpack.c.l.b16 %v544
    %v1470 = vunpack.c.h.b16 %v544
    %v1471 = vunpack.c.l.b16 %v545
    %v1472 = vunpack.c.h.b16 %v545
    %v1473 = vunpack.c.l.b16 %v546
    %v1474 = vunpack.c.h.b16 %v546
    %v1475 = vunpack.c.l.b16 %v547
    %v1476 = vunpack.c.h.b16 %v547
    %v1477 = vunpack.c.l.b16 %v548
    %v1478 = vunpack.c.h.b16 %v548
    %v1479 = vunpack.c.l.b16 %v549
    %v1480 = vunpack.c.h.b16 %v549
    %v1481 = vunpack.c.l.b16 %v550
    %v1482 = vunpack.c.h.b16 %v550
    %v1483 = vunpack.c.l.b16 %v551
    %v1484 = vunpack.c.h.b16 %v551
    %v1485 = vunpack.c.l.b16 %v552
    %v1486 = vunpack.c.h.b16 %v552
    %v1487 = vunpack.c.l.b16 %v553
    %v1488 = vunpack.c.h.b16 %v553
    %v1489 = vunpack.c.l.b16 %v554
    %v1490 = vunpack.c.h.b16 %v554
    %v1491 = vunpack.c.l.b16 %v555
    %v1492 = vunpack.c.h.b16 %v555
    %v1493 = vunpack.c.l.b16 %v556
    %v1494 = vunpack.c.h.b16 %v556
    %v1495 = vunpack.c.l.b16 %v557
    %v1496 = vunpack.c.h.b16 %v557
    %v1497 = vunpack.c.l.b16 %v558
    %v1498 = vunpack.c.h.b16 %v558
    %v1499 = vunpack.c.l.b16 %v559
    %v1500 = vunpack.c.h.b16 %v559
    %v1501 = vunpack.c.l.b16 %v560
    %v1502 = vunpack.c.h.b16 %v560
    %v1503 = vunpack.c.l.b16 %v561
    %v1504 = vunpack.c.h.b16 %v561
    %v1505 = vunpack.c.l.b16 %v562
    %v1506 = vunpack.c.h.b16 %v562
    %v1507 = vunpack.c.l.b16 %v563
    %v1508 = vunpack.c.h.b16 %v563
    %v1509 = vunpack.c.l.b16 %v564
    %v1510 = vunpack.c.h.b16 %v564
    %v1511 = vunpack.c.l.b16 %v565
    %v1512 = vunpack.c.h.b16 %v565
    %v1513 = vunpack.c.l.b16 %v566
    %v1514 = vunpack.c.h.b16 %v566
    %v1515 = vunpack.c.l.b16 %v567
    %v1516 = vunpack.c.h.b16 %v567
    %v1517 = vunpack.c.l.b16 %v568
    %v1518 = vunpack.c.h.b16 %v568
    %v1519 = vunpack.c.l.b16 %v569
    %v1520 = vunpack.c.h.b16 %v569
    %v1521 = vunpack.c.l.b16 %v570
    %v1522 = vunpack.c.h.b16 %v570
    %v1523 = vunpack.c.l.b16 %v571
    %v1524 = vunpack.c.h.b16 %v571
    %v1525 = vunpack.c.l.b16 %v572
    %v1526 = vunpack.c.h.b16 %v572
    %v1527 = vunpack.c.l.b16 %v573
    %v1528 = vunpack.c.h.b16 %v573
    %v1529 = vunpack.c.l.b16 %v574
    %v1530 = vunpack.c.h.b16 %v574
    %v1531 = vunpack.c.l.b16 %v575
    %v1532 = vunpack.c.h.b16 %v575
    %v1533 = vunpack.c.l.b16 %v576
    %v1534 = vunpack.c.h.b16 %v576
    %v1535 = vunpack.c.l.b16 %v577
    %v1536 = vunpack.c.h.b16 %v577
    %v1537 = vunpack.c.l.b16 %v578
    %v1538 = vunpack.c.h.b16 %v578
    %v1539 = vunpack.c.l.b16 %v579
    %v1540 = vunpack.c.h.b16 %v579
    %v1541 = vunpack.c.l.b16 %v580
    %v1542 = vunpack.c.h.b16 %v580
    %v1543 = vunpack.c.l.b16 %v581
    %v1544 = vunpack.c.h.b16 %v581
    %v1545 = vunpack.c.l.b16 %v582
    %v1546 = vunpack.c.h.b16 %v582
    %v1547 = vunpack.c.l.b16 %v583
    %v1548 = vunpack.c.h.b16 %v583
    %v1549 = vunpack.c.l.b16 %v584
    %v1550 = vunpack.c.h.b16 %v584
    %v1551 = vunpack.c.l.b16 %v585
    %v1552 = vunpack.c.h.b16 %v585
    %v1553 = vunpack.c.l.b16 %v586
    %v1554 = vunpack.c.h.b16 %v586
    %v1555 = vunpack.c.l.b16 %v587
    %v1556 = vunpack.c.h.b16 %v587
    %v1557 = vunpack.c.l.b16 %v588
    %v1558 = vunpack.c.h.b16 %v588
    %v1559 = vunpack.c.l.b16 %v589
    %v1560 = vunpack.c.h.b16 %v589
    %v1561 = vunpack.c.l.b16 %v590
    %v1562 = vunpack.c.h.b16 %v590
    %v1563 = vunpack.c.l.b16 %v591
    %v1564 = vunpack.c.h.b16 %v591
    %v1565 = vunpack.c.l.b16 %v592
    %v1566 = vunpack.c.h.b16 %v592
    %v1567 = vunpack.c.l.b16 %v593
    %v1568 = vunpack.c.h.b16 %v593
    %v1569 = vunpack.c.l.b16 %v594
    %v1570 = vunpack.c.h.b16 %v594
    %v1571 = vunpack.c.l.b16 %v595
    %v1572 = vunpack.c.h.b16 %v595
    %v1573 = vunpack.c.l.b16 %v596
    %v1574 = vunpack.c.h.b16 %v596
    %v1575 = vunpack.c.l.b16 %v597
    %v1576 = vunpack.c.h.b16 %v597
    %v1577 = vunpack.c.l.b16 %v598
    %v1578 = vunpack.c.h.b16 %v598
    %v1579 = vunpack.c.l.b16 %v599
    %v1580 = vunpack.c.h.b16 %v599
    %v1581 = vunpack.c.l.b16 %v600
    %v1582 = vunpack.c.h.b16 %v600
    %v1583 = vpack.c.b16 %v947, %v943
    %v1584 = vpack.c.b16 %v948, %v944
    %v1585 = vpack.c.b16 %v949, %v945
    %v1586 = vpack.c.b16 %v950, %v946
    %v1587 = vpack.c.b16 %v955, %v951
    %v1588 = vpack.c.b16 %v956, %v952
    %v1589 = vpack.c.b16 %v957, %v953
    %v1590 = vpack.c.b16 %v958, %v954
    %v1591 = vpack.c.b16 %v963, %v959
    %v1592 = vpack.c.b16 %v964, %v960
    %v1593 = vpack.c.b16 %v965, %v961
    %v1594 = vpack.c.b16 %v966, %v962
    %v1595 = vpack.c.b16 %v971, %v967
    %v1596 = vpack.c.b16 %v972, %v968
    %v1597 = vpack.c.b16 %v973, %v969
    %v1598 = vpack.c.b16 %v974, %v970
    %v1599 = vpack.c.b16 %v979, %v975
    %v1600 = vpack.c.b16 %v980, %v976
    %v1601 = vpack.c.b16 %v981, %v977
    %v1602 = vpack.c.b16 %v982, %v978
    %v1603 = vpack.c.b16 %v987, %v983
    %v1604 = vpack.c.b16 %v988, %v984
    %v1605 = vpack.c.b16 %v989, %v985
    %v1606 = vpack.c.b16 %v990, %v986
    %v1607 = vpack.c.b16 %v995, %v991
    %v1608 = vpack.c.b16 %v996, %v992
    %v1609 = vpack.c.b16 %v997, %v993
    %v1610 = vpack.c.b16 %v998, %v994
    %v1611 = vpack.c.b16 %v1003, %v999
    %v1612 = vpack.c.b16 %v1004, %v1000
    %v1613 = vpack.c.b16 %v1005, %v1001
    %v1614 = vpack.c.b16 %v1006, %v1002
    %v1615 = vpack.c.b16 %v1011, %v1007
    %v1616 = vpack.c.b16 %v1012, %v1008
    %v1617 = vpack.c.b16 %v1013, %v1009
    %v1618 = vpack.c.b16 %v1014, %v1010
    %v1619 = vpack.c.b16 %v1019, %v1015
    %v1620 = vpack.c.b16 %v1020, %v1016
    %v1621 = vpack.c.b16 %v1021, %v1017
    %v1622 = vpack.c.b16 %v1022, %v1018
    %v1623 = vpack.c.b16 %v1027, %v1023
    %v1624 = vpack.c.b16 %v1028, %v1024
    %v1625 = vpack.c.b16 %v1029, %v1025
    %v1626 = vpack.c.b16 %v1030, %v1026
    %v1627 = vpack.c.b16 %v1035, %v1031
    %v1628 = vpack.c.b16 %v1036, %v1032
    %v1629 = vpack.c.b16 %v1037, %v1033
    %v1630 = vpack.c.b16 %v1038, %v1034
    %v1631 = vpack.c.b16 %v1043, %v1039
    %v1632 = vpack.c.b16 %v1044, %v1040
    %v1633 = vpack.c.b16 %v1045, %v1041
    %v1634 = vpack.c.b16 %v1046, %v1042
    %v1635 = vpack.c.b16 %v1051, %v1047
    %v1636 = vpack.c.b16 %v1052, %v1048
    %v1637 = vpack.c.b16 %v1053, %v1049
    %v1638 = vpack.c.b16 %v1054, %v1050
    %v1639 = vpack.c.b16 %v1059, %v1055
    %v1640 = vpack.c.b16 %v1060, %v1056
    %v1641 = vpack.c.b16 %v1061, %v1057
    %v1642 = vpack.c.b16 %v1062, %v1058
    %v1643 = vpack.c.b16 %v1067, %v1063
    %v1644 = vpack.c.b16 %v1068, %v1064
    %v1645 = vpack.c.b16 %v1069, %v1065
    %v1646 = vpack.c.b16 %v1070, %v1066
    %v1647 = vpack.c.b16 %v1075, %v1071
    %v1648 = vpack.c.b16 %v1076, %v1072
    %v1649 = vpack.c.b16 %v1077, %v1073
    %v1650 = vpack.c.b16 %v1078, %v1074
    %v1651 = vpack.c.b16 %v1083, %v1079
    %v1652 = vpack.c.b16 %v1084, %v1080
    %v1653 = vpack.c.b16 %v1085, %v1081
    %v1654 = vpack.c.b16 %v1086, %v1082
    %v1655 = vpack.c.b16 %v1091, %v1087
    %v1656 = vpack.c.b16 %v1092, %v1088
    %v1657 = vpack.c.b16 %v1093, %v1089
    %v1658 = vpack.c.b16 %v1094, %v1090
    %v1659 = vpack.c.b16 %v1099, %v1095
    %v1660 = vpack.c.b16 %v1100, %v1096
    %v1661 = vpack.c.b16 %v1101, %v1097
    %v1662 = vpack.c.b16 %v1102, %v1098
    %v1663 = vpack.c.b16 %v1107, %v1103
    %v1664 = vpack.c.b16 %v1108, %v1104
    %v1665 = vpack.c.b16 %v1109, %v1105
    %v1666 = vpack.c.b16 %v1110, %v1106
    %v1667 = vpack.c.b16 %v1115, %v1111
    %v1668 = vpack.c.b16 %v1116, %v1112
    %v1669 = vpack.c.b16 %v1117, %v1113
    %v1670 = vpack.c.b16 %v1118, %v1114
    %v1671 = vpack.c.b16 %v1123, %v1119
    %v1672 = vpack.c.b16 %v1124, %v1120
    %v1673 = vpack.c.b16 %v1125, %v1121
    %v1674 = vpack.c.b16 %v1126, %v1122
    %v1675 = vpack.c.b16 %v1131, %v1127
    %v1676 = vpack.c.b16 %v1132, %v1128
    %v1677 = vpack.c.b16 %v1133, %v1129
    %v1678 = vpack.c.b16 %v1134, %v1130
    %v1679 = vpack.c.b16 %v1139, %v1135
    %v1680 = vpack.c.b16 %v1140, %v1136
    %v1681 = vpack.c.b16 %v1141, %v1137
    %v1682 = vpack.c.b16 %v1142, %v1138
    %v1683 = vpack.c.b16 %v1147, %v1143
    %v1684 = vpack.c.b16 %v1148, %v1144
    %v1685 = vpack.c.b16 %v1149, %v1145
    %v1686 = vpack.c.b16 %v1150, %v1146
    %v1687 = vpack.c.b16 %v1155, %v1151
    %v1688 = vpack.c.b16 %v1156, %v1152
    %v1689 = vpack.c.b16 %v1157, %v1153
    %v1690 = vpack.c.b16 %v1158, %v1154
    %v1691 = vpack.c.b16 %v1163, %v1159
    %v1692 = vpack.c.b16 %v1164, %v1160
    %v1693 = vpack.c.b16 %v1165, %v1161
    %v1694 = vpack.c.b16 %v1166, %v1162
    %v1695 = vpack.c.b16 %v1171, %v1167
    %v1696 = vpack.c.b16 %v1172, %v1168
    %v1697 = vpack.c.b16 %v1173, %v1169
    %v1698 = vpack.c.b16 %v1174, %v1170
    %v1699 = vpack.c.b16 %v1179, %v1175
    %v1700 = vpack.c.b16 %v1180, %v1176
    %v1701 = vpack.c.b16 %v1181, %v1177
    %v1702 = vpack.c.b16 %v1182, %v1178
    %v1703 = vpack.c.b16 %v1187, %v1183
    %v1704 = vpack.c.b16 %v1188, %v1184
    %v1705 = vpack.c.b16 %v1189, %v1185
    %v1706 = vpack.c.b16 %v1190, %v1186
    %v1707 = vpack.c.b16 %v1195, %v1191
    %v1708 = vpack.c.b16 %v1196, %v1192
    %v1709 = vpack.c.b16 %v1197, %v1193
    %v1710 = vpack.c.b16 %v1198, %v1194
    %v1711 = vpack.c.b16 %v1203, %v1199
    %v1712 = vpack.c.b16 %v1204, %v1200
    %v1713 = vpack.c.b16 %v1205, %v1201
    %v1714 = vpack.c.b16 %v1206, %v1202
    %v1715 = vpack.c.b16 %v1211, %v1207
    %v1716 = vpack.c.b16 %v1212, %v1208
    %v1717 = vpack.c.b16 %v1213, %v1209
    %v1718 = vpack.c.b16 %v1214, %v1210
    %v1719 = vpack.c.b16 %v1219, %v1215
    %v1720 = vpack.c.b16 %v1220, %v1216
    %v1721 = vpack.c.b16 %v1221, %v1217
    %v1722 = vpack.c.b16 %v1222, %v1218
    %v1723 = vpack.c.b16 %v1227, %v1223
    %v1724 = vpack.c.b16 %v1228, %v1224
    %v1725 = vpack.c.b16 %v1229, %v1225
    %v1726 = vpack.c.b16 %v1230, %v1226
    %v1727 = vpack.c.b16 %v1235, %v1231
    %v1728 = vpack.c.b16 %v1236, %v1232
    %v1729 = vpack.c.b16 %v1237, %v1233
    %v1730 = vpack.c.b16 %v1238, %v1234
    %v1731 = vpack.c.b16 %v1243, %v1239
    %v1732 = vpack.c.b16 %v1244, %v1240
    %v1733 = vpack.c.b16 %v1245, %v1241
    %v1734 = vpack.c.b16 %v1246, %v1242
    %v1735 = vpack.c.b16 %v1251, %v1247
    %v1736 = vpack.c.b16 %v1252, %v1248
    %v1737 = vpack.c.b16 %v1253, %v1249
    %v1738 = vpack.c.b16 %v1254, %v1250
    %v1739 = vpack.c.b16 %v1259, %v1255
    %v1740 = vpack.c.b16 %v1260, %v1256
    %v1741 = vpack.c.b16 %v1261, %v1257
    %v1742 = vpack.c.b16 %v1262, %v1258
    %v1743 = vpack.c.b16 %v1267, %v1263
    %v1744 = vpack.c.b16 %v1268, %v1264
    %v1745 = vpack.c.b16 %v1269, %v1265
    %v1746 = vpack.c.b16 %v1270, %v1266
    %v1747 = vpack.c.b16 %v1275, %v1271
    %v1748 = vpack.c.b16 %v1276, %v1272
    %v1749 = vpack.c.b16 %v1277, %v1273
    %v1750 = vpack.c.b16 %v1278, %v1274
    %v1751 = vpack.c.b16 %v1283, %v1279
    %v1752 = vpack.c.b16 %v1284, %v1280
    %v1753 = vpack.c.b16 %v1285, %v1281
    %v1754 = vpack.c.b16 %v1286, %v1282
    %v1755 = vpack.c.b16 %v1291, %v1287
    %v1756 = vpack.c.b16 %v1292, %v1288
    %v1757 = vpack.c.b16 %v1293, %v1289
    %v1758 = vpack.c.b16 %v1294, %v1290
    %v1759 = vpack.c.b16 %v1299, %v1295
    %v1760 = vpack.c.b16 %v1300, %v1296
    %v1761 = vpack.c.b16 %v1301, %v1297
    %v1762 = vpack.c.b16 %v1302, %v1298
    %v1763 = vpack.c.b16 %v1307, %v1303
    %v1764 = vpack.c.b16 %v1308, %v1304
    %v1765 = vpack.c.b16 %v1309, %v1305
    %v1766 = vpack.c.b16 %v1310, %v1306
    %v1767 = vpack.c.b16 %v1315, %v1311
    %v1768 = vpack.c.b16 %v1316, %v1312
    %v1769 = vpack.c.b16 %v1317, %v1313
    %v1770 = vpack.c.b16 %v1318, %v1314
    %v1771 = vpack.c.b16 %v1323, %v1319
    %v1772 = vpack.c.b16 %v1324, %v1320
    %v1773 = vpack.c.b16 %v1325, %v1321
    %v1774 = vpack.c.b16 %v1326, %v1322
    %v1775 = vpack.c.b16 %v1331, %v1327
    %v1776 = vpack.c.b16 %v1332, %v1328
    %v1777 = vpack.c.b16 %v1333, %v1329
    %v1778 = vpack.c.b16 %v1334, %v1330
    %v1779 = vpack.c.b16 %v1339, %v1335
    %v1780 = vpack.c.b16 %v1340, %v1336
    %v1781 = vpack.c.b16 %v1341, %v1337
    %v1782 = vpack.c.b16 %v1342, %v1338
    %v1783 = vpack.c.b16 %v1347, %v1343
    %v1784 = vpack.c.b16 %v1348, %v1344
    %v1785 = vpack.c.b16 %v1349, %v1345
    %v1786 = vpack.c.b16 %v1350, %v1346
    %v1787 = vpack.c.b16 %v1355, %v1351
    %v1788 = vpack.c.b16 %v1356, %v1352
    %v1789 = vpack.c.b16 %v1357, %v1353
    %v1790 = vpack.c.b16 %v1358, %v1354
    %v1791 = vpack.c.b16 %v1363, %v1359
    %v1792 = vpack.c.b16 %v1364, %v1360
    %v1793 = vpack.c.b16 %v1365, %v1361
    %v1794 = vpack.c.b16 %v1366, %v1362
    %v1795 = vpack.c.b16 %v1371, %v1367
    %v1796 = vpack.c.b16 %v1372, %v1368
    %v1797 = vpack.c.b16 %v1373, %v1369
    %v1798 = vpack.c.b16 %v1374, %v1370
    %v1799 = vpack.c.b16 %v1379, %v1375
    %v1800 = vpack.c.b16 %v1380, %v1376
    %v1801 = vpack.c.b16 %v1381, %v1377
    %v1802 = vpack.c.b16 %v1382, %v1378
    %v1803 = vpack.c.b16 %v1387, %v1383
    %v1804 = vpack.c.b16 %v1388, %v1384
    %v1805 = vpack.c.b16 %v1389, %v1385
    %v1806 = vpack.c.b16 %v1390, %v1386
    %v1807 = vpack.c.b16 %v1395, %v1391
    %v1808 = vpack.c.b16 %v1396, %v1392
    %v1809 = vpack.c.b16 %v1397, %v1393
    %v1810 = vpack.c.b16 %v1398, %v1394
    %v1811 = vpack.c.b16 %v1403, %v1399
    %v1812 = vpack.c.b16 %v1404, %v1400
    %v1813 = vpack.c.b16 %v1405, %v1401
    %v1814 = vpack.c.b16 %v1406, %v1402
    %v1815 = vpack.c.b16 %v1411, %v1407
    %v1816 = vpack.c.b16 %v1412, %v1408
    %v1817 = vpack.c.b16 %v1413, %v1409
    %v1818 = vpack.c.b16 %v1414, %v1410
    %v1819 = vpack.c.b16 %v1419, %v1415
    %v1820 = vpack.c.b16 %v1420, %v1416
    %v1821 = vpack.c.b16 %v1421, %v1417
    %v1822 = vpack.c.b16 %v1422, %v1418
    %v1823 = vpack.c.b16 %v1427, %v1423
    %v1824 = vpack.c.b16 %v1428, %v1424
    %v1825 = vpack.c.b16 %v1429, %v1425
    %v1826 = vpack.c.b16 %v1430, %v1426
    %v1827 = vpack.c.b16 %v1435, %v1431
    %v1828 = vpack.c.b16 %v1436, %v1432
    %v1829 = vpack.c.b16 %v1437, %v1433
    %v1830 = vpack.c.b16 %v1438, %v1434
    %v1831 = vpack.c.b16 %v1443, %v1439
    %v1832 = vpack.c.b16 %v1444, %v1440
    %v1833 = vpack.c.b16 %v1445, %v1441
    %v1834 = vpack.c.b16 %v1446, %v1442
    %v1835 = vpack.c.b16 %v1451, %v1447
    %v1836 = vpack.c.b16 %v1452, %v1448
    %v1837 = vpack.c.b16 %v1453, %v1449
    %v1838 = vpack.c.b16 %v1454, %v1450
    %v1839 = vpack.c.b16 %v1459, %v1455
    %v1840 = vpack.c.b16 %v1460, %v1456
    %v1841 = vpack.c.b16 %v1461, %v1457
    %v1842 = vpack.c.b16 %v1462, %v1458
    %v1843 = vpack.c.b16 %v1467, %v1463
    %v1844 = vpack.c.b16 %v1468, %v1464
    %v1845 = vpack.c.b16 %v1469, %v1465
    %v1846 = vpack.c.b16 %v1470, %v1466
    %v1847 = vpack.c.b16 %v1475, %v1471
    %v1848 = vpack.c.b16 %v1476, %v1472
    %v1849 = vpack.c.b16 %v1477, %v1473
    %v1850 = vpack.c.b16 %v1478, %v1474
    %v1851 = vpack.c.b16 %v1483, %v1479
    %v1852 = vpack.c.b16 %v1484, %v1480
    %v1853 = vpack.c.b16 %v1485, %v1481
    %v1854 = vpack.c.b16 %v1486, %v1482
    %v1855 = vpack.c.b16 %v1491, %v1487
    %v1856 = vpack.c.b16 %v1492, %v1488
    %v1857 = vpack.c.b16 %v1493, %v1489
    %v1858 = vpack.c.b16 %v1494, %v1490
    %v1859 = vpack.c.b16 %v1499, %v1495
    %v1860 = vpack.c.b16 %v1500, %v1496
    %v1861 = vpack.c.b16 %v1501, %v1497
    %v1862 = vpack.c.b16 %v1502, %v1498
    %v1863 = vpack.c.b16 %v1507, %v1503
    %v1864 = vpack.c.b16 %v1508, %v1504
    %v1865 = vpack.c.b16 %v1509, %v1505
    %v1866 = vpack.c.b16 %v1510, %v1506
    %v1867 = vpack.c.b16 %v1515, %v1511
    %v1868 = vpack.c.b16 %v1516, %v1512
    %v1869 = vpack.c.b16 %v1517, %v1513
    %v1870 = vpack.c.b16 %v1518, %v1514
    %v1871 = vpack.c.b16 %v1523, %v1519
    %v1872 = vpack.c.b16 %v1524, %v1520
    %v1873 = vpack.c.b16 %v1525, %v1521
    %v1874 = vpack.c.b16 %v1526, %v1522
    %v1875 = vpack.c.b16 %v1531, %v1527
    %v1876 = vpack.c.b16 %v1532, %v1528
    %v1877 = vpack.c.b16 %v1533, %v1529
    %v1878 = vpack.c.b16 %v1534, %v1530
    %v1879 = vpack.c.b16 %v1539, %v1535
    %v1880 = vpack.c.b16 %v1540, %v1536
    %v1881 = vpack.c.b16 %v1541, %v1537
    %v1882 = vpack.c.b16 %v1542, %v1538
    %v1883 = vpack.c.b16 %v1547, %v1543
    %v1884 = vpack.c.b16 %v1548, %v1544
    %v1885 = vpack.c.b16 %v1549, %v1545
    %v1886 = vpack.c.b16 %v1550, %v1546
    %v1887 = vpack.c.b16 %v1555, %v1551
    %v1888 = vpack.c.b16 %v1556, %v1552
    %v1889 = vpack.c.b16 %v1557, %v1553
    %v1890 = vpack.c.b16 %v1558, %v1554
    %v1891 = vpack.c.b16 %v1563, %v1559
    %v1892 = vpack.c.b16 %v1564, %v1560
    %v1893 = vpack.c.b16 %v1565, %v1561
    %v1894 = vpack.c.b16 %v1566, %v1562
    %v1895 = vpack.c.b16 %v1571, %v1567
    %v1896 = vpack.c.b16 %v1572, %v1568
    %v1897 = vpack.c.b16 %v1573, %v1569
    %v1898 = vpack.c.b16 %v1574, %v1570
    %v1899 = vpack.c.b16 %v1579, %v1575
    %v1900 = vpack.c.b16 %v1580, %v1576
    %v1901 = vpack.c.b16 %v1581, %v1577
    %v1902 = vpack.c.b16 %v1582, %v1578
    %2223 = vmatprep.subr.bf16.mxu0 %v1584
    %2224 = vmatpush1.bf16.msra.mxu0 %v1583
    %2225 = vmatprep.subr.bf16.mxu0 %v1588
    %2226 = vmatpush1.bf16.msra.mxu0 %v1587
    %2227 = vmatprep.subr.bf16.mxu0 %v1592
    %2228 = vmatpush1.bf16.msra.mxu0 %v1591
    %2229 = vmatprep.subr.bf16.mxu0 %v1596
    %2230 = vmatpush1.bf16.msra.mxu0 %v1595
    %2231 = vmatprep.subr.bf16.mxu0 %v1600
    %2232 = vmatpush1.bf16.msra.mxu0 %v1599
    %2233 = vmatprep.subr.bf16.mxu0 %v1604
    %2234 = vmatpush1.bf16.msra.mxu0 %v1603
    %2235 = vmatprep.subr.bf16.mxu0 %v1608
    %2236 = vmatpush1.bf16.msra.mxu0 %v1607
    %2237 = vmatprep.subr.bf16.mxu0 %v1612
    %2238 = vmatpush1.bf16.msra.mxu0 %v1611
    %2239 = vmatprep.subr.bf16.mxu0 %v1616
    %2240 = vmatpush1.bf16.msra.mxu0 %v1615
    %2241 = vmatprep.subr.bf16.mxu0 %v1620
    %2242 = vmatpush1.bf16.msra.mxu0 %v1619
    %2243 = vmatprep.subr.bf16.mxu0 %v1624
    %2244 = vmatpush1.bf16.msra.mxu0 %v1623
    %2245 = vmatprep.subr.bf16.mxu0 %v1628
    %2246 = vmatpush1.bf16.msra.mxu0 %v1627
    %2247 = vmatprep.subr.bf16.mxu0 %v1632
    %2248 = vmatpush1.bf16.msra.mxu0 %v1631
    %2249 = vmatprep.subr.bf16.mxu0 %v1636
    %2250 = vmatpush1.bf16.msra.mxu0 %v1635
    %2251 = vmatprep.subr.bf16.mxu0 %v1640
    %2252 = vmatpush1.bf16.msra.mxu0 %v1639
    %2253 = vmatprep.subr.bf16.mxu0 %v1644
    %2254 = vmatpush1.bf16.msra.mxu0 %v1643
    %2255 = vmatprep.mubr.bf16.mxu0 %v272
    %2256 = vmatmul.mubr.bf16.gmra.mrb[0].mxu0 %v271
    %v2257 = vpop.f32.mrb[0].mxu0
    %v2258 = vadd.f32 %v606, %v2257
    %v2259 = vpop.f32.mrb[0].mxu0
    %v2260 = vadd.f32 %v610, %v2259
    %v2261 = vpop.f32.mrb[0].mxu0
    %v2262 = vpop.f32.mrb[0].mxu0
    %2263 = vdwg.mxu0
    %2264 = vmatprep.subr.bf16.mxu0 %v1648
    %2265 = vmatpush1.bf16.msra.mxu0 %v1647
    %2266 = vmatprep.subr.bf16.mxu0 %v1652
    %2267 = vmatpush1.bf16.msra.mxu0 %v1651
    %2268 = vmatprep.subr.bf16.mxu0 %v1656
    %2269 = vmatpush1.bf16.msra.mxu0 %v1655
    %2270 = vmatprep.subr.bf16.mxu0 %v1660
    %2271 = vmatpush1.bf16.msra.mxu0 %v1659
    %2272 = vmatprep.subr.bf16.mxu0 %v1664
    %2273 = vmatpush1.bf16.msra.mxu0 %v1663
    %2274 = vmatprep.subr.bf16.mxu0 %v1668
    %2275 = vmatpush1.bf16.msra.mxu0 %v1667
    %2276 = vmatprep.subr.bf16.mxu0 %v1672
    %2277 = vmatpush1.bf16.msra.mxu0 %v1671
    %2278 = vmatprep.subr.bf16.mxu0 %v1676
    %2279 = vmatpush1.bf16.msra.mxu0 %v1675
    %2280 = vmatprep.subr.bf16.mxu0 %v1680
    %2281 = vmatpush1.bf16.msra.mxu0 %v1679
    %2282 = vmatprep.subr.bf16.mxu0 %v1684
    %2283 = vmatpush1.bf16.msra.mxu0 %v1683
    %2284 = vmatprep.subr.bf16.mxu0 %v1688
    %2285 = vmatpush1.bf16.msra.mxu0 %v1687
    %2286 = vmatprep.subr.bf16.mxu0 %v1692
    %2287 = vmatpush1.bf16.msra.mxu0 %v1691
    %2288 = vmatprep.subr.bf16.mxu0 %v1696
    %2289 = vmatpush1.bf16.msra.mxu0 %v1695
    %2290 = vmatprep.subr.bf16.mxu0 %v1700
    %2291 = vmatpush1.bf16.msra.mxu0 %v1699
    %2292 = vmatprep.subr.bf16.mxu0 %v1704
    %2293 = vmatpush1.bf16.msra.mxu0 %v1703
    %2294 = vmatprep.subr.bf16.mxu0 %v1708
    %2295 = vmatpush1.bf16.msra.mxu0 %v1707
    %2296 = vmatprep.mubr.bf16.mxu0 %v274
    %2297 = vmatmul.mubr.bf16.gmra.mrb[0].mxu0 %v273
    %v2298 = vpop.f32.mrb[0].mxu0
    %v2299 = vadd.f32 %v2258, %v2298
    %v2300 = vpop.f32.mrb[0].mxu0
    %v2301 = vadd.f32 %v2260, %v2300
    %v2302 = vpop.f32.mrb[0].mxu0
    %v2303 = vpop.f32.mrb[0].mxu0
    %2304 = vdwg.mxu0
    %2305 = vmatprep.subr.bf16.mxu0 %v1712
    %2306 = vmatpush1.bf16.msra.mxu0 %v1711
    %2307 = vmatprep.subr.bf16.mxu0 %v1716
    %2308 = vmatpush1.bf16.msra.mxu0 %v1715
    %2309 = vmatprep.subr.bf16.mxu0 %v1720
    %2310 = vmatpush1.bf16.msra.mxu0 %v1719
    %2311 = vmatprep.subr.bf16.mxu0 %v1724
    %2312 = vmatpush1.bf16.msra.mxu0 %v1723
    %2313 = vmatprep.subr.bf16.mxu0 %v1728
    %2314 = vmatpush1.bf16.msra.mxu0 %v1727
    %2315 = vmatprep.subr.bf16.mxu0 %v1732
    %2316 = vmatpush1.bf16.msra.mxu0 %v1731
    %2317 = vmatprep.subr.bf16.mxu0 %v1736
    %2318 = vmatpush1.bf16.msra.mxu0 %v1735
    %2319 = vmatprep.subr.bf16.mxu0 %v1740
    %2320 = vmatpush1.bf16.msra.mxu0 %v1739
    %2321 = vmatprep.subr.bf16.mxu0 %v1744
    %2322 = vmatpush1.bf16.msra.mxu0 %v1743
    %2323 = vmatprep.subr.bf16.mxu0 %v1748
    %2324 = vmatpush1.bf16.msra.mxu0 %v1747
    %2325 = vmatprep.subr.bf16.mxu0 %v1752
    %2326 = vmatpush1.bf16.msra.mxu0 %v1751
    %2327 = vmatprep.subr.bf16.mxu0 %v1756
    %2328 = vmatpush1.bf16.msra.mxu0 %v1755
    %2329 = vmatprep.subr.bf16.mxu0 %v1760
    %2330 = vmatpush1.bf16.msra.mxu0 %v1759
    %2331 = vmatprep.subr.bf16.mxu0 %v1764
    %2332 = vmatpush1.bf16.msra.mxu0 %v1763
    %2333 = vmatprep.subr.bf16.mxu0 %v1768
    %2334 = vmatpush1.bf16.msra.mxu0 %v1767
    %2335 = vmatprep.subr.bf16.mxu0 %v1772
    %2336 = vmatpush1.bf16.msra.mxu0 %v1771
    %2337 = vmatprep.mubr.bf16.mxu0 %v276
    %2338 = vmatmul.mubr.bf16.gmra.mrb[0].mxu0 %v275
    %v2339 = vpop.f32.mrb[0].mxu0
    %v2340 = vadd.f32 %v2299, %v2339
    %v2341 = vpop.f32.mrb[0].mxu0
    %v2342 = vadd.f32 %v2301, %v2341
    %v2343 = vpop.f32.mrb[0].mxu0
    %v2344 = vpop.f32.mrb[0].mxu0
    %2345 = vdwg.mxu0
    %2346 = vmatprep.subr.bf16.mxu0 %v1776
    %2347 = vmatpush1.bf16.msra.mxu0 %v1775
    %2348 = vmatprep.subr.bf16.mxu0 %v1780
    %2349 = vmatpush1.bf16.msra.mxu0 %v1779
    %2350 = vmatprep.subr.bf16.mxu0 %v1784
    %2351 = vmatpush1.bf16.msra.mxu0 %v1783
    %2352 = vmatprep.subr.bf16.mxu0 %v1788
    %2353 = vmatpush1.bf16.msra.mxu0 %v1787
    %2354 = vmatprep.subr.bf16.mxu0 %v1792
    %2355 = vmatpush1.bf16.msra.mxu0 %v1791
    %2356 = vmatprep.subr.bf16.mxu0 %v1796
    %2357 = vmatpush1.bf16.msra.mxu0 %v1795
    %2358 = vmatprep.subr.bf16.mxu0 %v1800
    %2359 = vmatpush1.bf16.msra.mxu0 %v1799
    %2360 = vmatprep.subr.bf16.mxu0 %v1804
    %2361 = vmatpush1.bf16.msra.mxu0 %v1803
    %2362 = vmatprep.subr.bf16.mxu0 %v1808
    %2363 = vmatpush1.bf16.msra.mxu0 %v1807
    %2364 = vmatprep.subr.bf16.mxu0 %v1812
    %2365 = vmatpush1.bf16.msra.mxu0 %v1811
    %2366 = vmatprep.subr.bf16.mxu0 %v1816
    %2367 = vmatpush1.bf16.msra.mxu0 %v1815
    %2368 = vmatprep.subr.bf16.mxu0 %v1820
    %2369 = vmatpush1.bf16.msra.mxu0 %v1819
    %2370 = vmatprep.subr.bf16.mxu0 %v1824
    %2371 = vmatpush1.bf16.msra.mxu0 %v1823
    %2372 = vmatprep.subr.bf16.mxu0 %v1828
    %2373 = vmatpush1.bf16.msra.mxu0 %v1827
    %2374 = vmatprep.subr.bf16.mxu0 %v1832
    %2375 = vmatpush1.bf16.msra.mxu0 %v1831
    %2376 = vmatprep.subr.bf16.mxu0 %v1836
    %2377 = vmatpush1.bf16.msra.mxu0 %v1835
    %2378 = vmatprep.mubr.bf16.mxu0 %v278
    %2379 = vmatmul.mubr.bf16.gmra.mrb[0].mxu0 %v277
    %v2380 = vpop.f32.mrb[0].mxu0
    %v2381 = vadd.f32 %v2340, %v2380
    %v2382 = vpop.f32.mrb[0].mxu0
    %v2383 = vadd.f32 %v2342, %v2382
    %v2384 = vpop.f32.mrb[0].mxu0
    %v2385 = vpop.f32.mrb[0].mxu0
    %2386 = vdwg.mxu0
    %2387 = vmatprep.subr.bf16.mxu0 %v1840
    %2388 = vmatpush1.bf16.msra.mxu0 %v1839
    %2389 = vmatprep.subr.bf16.mxu0 %v1844
    %2390 = vmatpush1.bf16.msra.mxu0 %v1843
    %2391 = vmatprep.subr.bf16.mxu0 %v1848
    %2392 = vmatpush1.bf16.msra.mxu0 %v1847
    %2393 = vmatprep.subr.bf16.mxu0 %v1852
    %2394 = vmatpush1.bf16.msra.mxu0 %v1851
    %2395 = vmatprep.subr.bf16.mxu0 %v1856
    %2396 = vmatpush1.bf16.msra.mxu0 %v1855
    %2397 = vmatprep.subr.bf16.mxu0 %v1860
    %2398 = vmatpush1.bf16.msra.mxu0 %v1859
    %2399 = vmatprep.subr.bf16.mxu0 %v1864
    %2400 = vmatpush1.bf16.msra.mxu0 %v1863
    %2401 = vmatprep.subr.bf16.mxu0 %v1868
    %2402 = vmatpush1.bf16.msra.mxu0 %v1867
    %2403 = vmatprep.subr.bf16.mxu0 %v1872
    %2404 = vmatpush1.bf16.msra.mxu0 %v1871
    %2405 = vmatprep.subr.bf16.mxu0 %v1876
    %2406 = vmatpush1.bf16.msra.mxu0 %v1875
    %2407 = vmatprep.subr.bf16.mxu0 %v1880
    %2408 = vmatpush1.bf16.msra.mxu0 %v1879
    %2409 = vmatprep.subr.bf16.mxu0 %v1884
    %2410 = vmatpush1.bf16.msra.mxu0 %v1883
    %2411 = vmatprep.subr.bf16.mxu0 %v1888
    %2412 = vmatpush1.bf16.msra.mxu0 %v1887
    %2413 = vmatprep.subr.bf16.mxu0 %v1892
    %2414 = vmatpush1.bf16.msra.mxu0 %v1891
    %2415 = vmatprep.subr.bf16.mxu0 %v1896
    %2416 = vmatpush1.bf16.msra.mxu0 %v1895
    %2417 = vmatprep.subr.bf16.mxu0 %v1900
    %2418 = vmatpush1.bf16.msra.mxu0 %v1899
    %2419 = vmatprep.mubr.bf16.mxu0 %v280
    %2420 = vmatmul.mubr.bf16.gmra.mrb[0].mxu0 %v279
    %v2421 = vpop.f32.mrb[0].mxu0
    %v2422 = vadd.f32 %v2381, %v2421
    %v2423 = vpop.f32.mrb[0].mxu0
    %v2424 = vadd.f32 %v2383, %v2423
    %v2425 = vpop.f32.mrb[0].mxu0
    %v2426 = vpop.f32.mrb[0].mxu0
    %2427 = vdwg.mxu0
    %2428 = vmatprep.subr.bf16.mxu0 %v1586
    %2429 = vmatpush1.bf16.msra.mxu0 %v1585
    %2430 = vmatprep.subr.bf16.mxu0 %v1590
    %2431 = vmatpush1.bf16.msra.mxu0 %v1589
    %2432 = vmatprep.subr.bf16.mxu0 %v1594
    %2433 = vmatpush1.bf16.msra.mxu0 %v1593
    %2434 = vmatprep.subr.bf16.mxu0 %v1598
    %2435 = vmatpush1.bf16.msra.mxu0 %v1597
    %2436 = vmatprep.subr.bf16.mxu0 %v1602
    %2437 = vmatpush1.bf16.msra.mxu0 %v1601
    %2438 = vmatprep.subr.bf16.mxu0 %v1606
    %2439 = vmatpush1.bf16.msra.mxu0 %v1605
    %2440 = vmatprep.subr.bf16.mxu0 %v1610
    %2441 = vmatpush1.bf16.msra.mxu0 %v1609
    %2442 = vmatprep.subr.bf16.mxu0 %v1614
    %2443 = vmatpush1.bf16.msra.mxu0 %v1613
    %2444 = vmatprep.subr.bf16.mxu0 %v1618
    %2445 = vmatpush1.bf16.msra.mxu0 %v1617
    %2446 = vmatprep.subr.bf16.mxu0 %v1622
    %2447 = vmatpush1.bf16.msra.mxu0 %v1621
    %2448 = vmatprep.subr.bf16.mxu0 %v1626
    %2449 = vmatpush1.bf16.msra.mxu0 %v1625
    %2450 = vmatprep.subr.bf16.mxu0 %v1630
    %2451 = vmatpush1.bf16.msra.mxu0 %v1629
    %2452 = vmatprep.subr.bf16.mxu0 %v1634
    %2453 = vmatpush1.bf16.msra.mxu0 %v1633
    %2454 = vmatprep.subr.bf16.mxu0 %v1638
    %2455 = vmatpush1.bf16.msra.mxu0 %v1637
    %2456 = vmatprep.subr.bf16.mxu0 %v1642
    %2457 = vmatpush1.bf16.msra.mxu0 %v1641
    %2458 = vmatprep.subr.bf16.mxu0 %v1646
    %2459 = vmatpush1.bf16.msra.mxu0 %v1645
    %2460 = vmatprep.mubr.bf16.mxu0 %v272
    %2461 = vmatmul.mubr.bf16.gmra.mrb[0].mxu0 %v271
    %v2462 = vpop.f32.mrb[0].mxu0
    %v2463 = vadd.f32 %v614, %v2462
    %v2464 = vpop.f32.mrb[0].mxu0
    %v2465 = vadd.f32 %v618, %v2464
    %v2466 = vpop.f32.mrb[0].mxu0
    %v2467 = vpop.f32.mrb[0].mxu0
    %2468 = vdwg.mxu0
    %2469 = vmatprep.subr.bf16.mxu0 %v1650
    %2470 = vmatpush1.bf16.msra.mxu0 %v1649
    %2471 = vmatprep.subr.bf16.mxu0 %v1654
    %2472 = vmatpush1.bf16.msra.mxu0 %v1653
    %2473 = vmatprep.subr.bf16.mxu0 %v1658
    %2474 = vmatpush1.bf16.msra.mxu0 %v1657
    %2475 = vmatprep.subr.bf16.mxu0 %v1662
    %2476 = vmatpush1.bf16.msra.mxu0 %v1661
    %2477 = vmatprep.subr.bf16.mxu0 %v1666
    %2478 = vmatpush1.bf16.msra.mxu0 %v1665
    %2479 = vmatprep.subr.bf16.mxu0 %v1670
    %2480 = vmatpush1.bf16.msra.mxu0 %v1669
    %2481 = vmatprep.subr.bf16.mxu0 %v1674
    %2482 = vmatpush1.bf16.msra.mxu0 %v1673
    %2483 = vmatprep.subr.bf16.mxu0 %v1678
    %2484 = vmatpush1.bf16.msra.mxu0 %v1677
    %2485 = vmatprep.subr.bf16.mxu0 %v1682
    %2486 = vmatpush1.bf16.msra.mxu0 %v1681
    %2487 = vmatprep.subr.bf16.mxu0 %v1686
    %2488 = vmatpush1.bf16.msra.mxu0 %v1685
    %2489 = vmatprep.subr.bf16.mxu0 %v1690
    %2490 = vmatpush1.bf16.msra.mxu0 %v1689
    %2491 = vmatprep.subr.bf16.mxu0 %v1694
    %2492 = vmatpush1.bf16.msra.mxu0 %v1693
    %2493 = vmatprep.subr.bf16.mxu0 %v1698
    %2494 = vmatpush1.bf16.msra.mxu0 %v1697
    %2495 = vmatprep.subr.bf16.mxu0 %v1702
    %2496 = vmatpush1.bf16.msra.mxu0 %v1701
    %2497 = vmatprep.subr.bf16.mxu0 %v1706
    %2498 = vmatpush1.bf16.msra.mxu0 %v1705
    %2499 = vmatprep.subr.bf16.mxu0 %v1710
    %2500 = vmatpush1.bf16.msra.mxu0 %v1709
    %2501 = vmatprep.mubr.bf16.mxu0 %v274
    %2502 = vmatmul.mubr.bf16.gmra.mrb[0].mxu0 %v273
    %v2503 = vpop.f32.mrb[0].mxu0
    %v2504 = vadd.f32 %v2463, %v2503
    %v2505 = vpop.f32.mrb[0].mxu0
    %v2506 = vadd.f32 %v2465, %v2505
    %v2507 = vpop.f32.mrb[0].mxu0
    %v2508 = vpop.f32.mrb[0].mxu0
    %2509 = vdwg.mxu0
    %2510 = vmatprep.subr.bf16.mxu0 %v1714
    %2511 = vmatpush1.bf16.msra.mxu0 %v1713
    %2512 = vmatprep.subr.bf16.mxu0 %v1718
    %2513 = vmatpush1.bf16.msra.mxu0 %v1717
    %2514 = vmatprep.subr.bf16.mxu0 %v1722
    %2515 = vmatpush1.bf16.msra.mxu0 %v1721
    %2516 = vmatprep.subr.bf16.mxu0 %v1726
    %2517 = vmatpush1.bf16.msra.mxu0 %v1725
    %2518 = vmatprep.subr.bf16.mxu0 %v1730
    %2519 = vmatpush1.bf16.msra.mxu0 %v1729
    %2520 = vmatprep.subr.bf16.mxu0 %v1734
    %2521 = vmatpush1.bf16.msra.mxu0 %v1733
    %2522 = vmatprep.subr.bf16.mxu0 %v1738
    %2523 = vmatpush1.bf16.msra.mxu0 %v1737
    %2524 = vmatprep.subr.bf16.mxu0 %v1742
    %2525 = vmatpush1.bf16.msra.mxu0 %v1741
    %2526 = vmatprep.subr.bf16.mxu0 %v1746
    %2527 = vmatpush1.bf16.msra.mxu0 %v1745
    %2528 = vmatprep.subr.bf16.mxu0 %v1750
    %2529 = vmatpush1.bf16.msra.mxu0 %v1749
    %2530 = vmatprep.subr.bf16.mxu0 %v1754
    %2531 = vmatpush1.bf16.msra.mxu0 %v1753
    %2532 = vmatprep.subr.bf16.mxu0 %v1758
    %2533 = vmatpush1.bf16.msra.mxu0 %v1757
    %2534 = vmatprep.subr.bf16.mxu0 %v1762
    %2535 = vmatpush1.bf16.msra.mxu0 %v1761
    %2536 = vmatprep.subr.bf16.mxu0 %v1766
    %2537 = vmatpush1.bf16.msra.mxu0 %v1765
    %2538 = vmatprep.subr.bf16.mxu0 %v1770
    %2539 = vmatpush1.bf16.msra.mxu0 %v1769
    %2540 = vmatprep.subr.bf16.mxu0 %v1774
    %2541 = vmatpush1.bf16.msra.mxu0 %v1773
    %2542 = vmatprep.mubr.bf16.mxu0 %v276
    %2543 = vmatmul.mubr.bf16.gmra.mrb[0].mxu0 %v275
    %v2544 = vpop.f32.mrb[0].mxu0
    %v2545 = vadd.f32 %v2504, %v2544
    %v2546 = vpop.f32.mrb[0].mxu0
    %v2547 = vadd.f32 %v2506, %v2546
    %v2548 = vpop.f32.mrb[0].mxu0
    %v2549 = vpop.f32.mrb[0].mxu0
    %2550 = vdwg.mxu0
    %2551 = vmatprep.subr.bf16.mxu0 %v1778
    %2552 = vmatpush1.bf16.msra.mxu0 %v1777
    %2553 = vmatprep.subr.bf16.mxu0 %v1782
    %2554 = vmatpush1.bf16.msra.mxu0 %v1781
    %2555 = vmatprep.subr.bf16.mxu0 %v1786
    %2556 = vmatpush1.bf16.msra.mxu0 %v1785
    %2557 = vmatprep.subr.bf16.mxu0 %v1790
    %2558 = vmatpush1.bf16.msra.mxu0 %v1789
    %2559 = vmatprep.subr.bf16.mxu0 %v1794
    %2560 = vmatpush1.bf16.msra.mxu0 %v1793
    %2561 = vmatprep.subr.bf16.mxu0 %v1798
    %2562 = vmatpush1.bf16.msra.mxu0 %v1797
    %2563 = vmatprep.subr.bf16.mxu0 %v1802
    %2564 = vmatpush1.bf16.msra.mxu0 %v1801
    %2565 = vmatprep.subr.bf16.mxu0 %v1806
    %2566 = vmatpush1.bf16.msra.mxu0 %v1805
    %2567 = vmatprep.subr.bf16.mxu0 %v1810
    %2568 = vmatpush1.bf16.msra.mxu0 %v1809
    %2569 = vmatprep.subr.bf16.mxu0 %v1814
    %2570 = vmatpush1.bf16.msra.mxu0 %v1813
    %2571 = vmatprep.subr.bf16.mxu0 %v1818
    %2572 = vmatpush1.bf16.msra.mxu0 %v1817
    %2573 = vmatprep.subr.bf16.mxu0 %v1822
    %2574 = vmatpush1.bf16.msra.mxu0 %v1821
    %2575 = vmatprep.subr.bf16.mxu0 %v1826
    %2576 = vmatpush1.bf16.msra.mxu0 %v1825
    %2577 = vmatprep.subr.bf16.mxu0 %v1830
    %2578 = vmatpush1.bf16.msra.mxu0 %v1829
    %2579 = vmatprep.subr.bf16.mxu0 %v1834
    %2580 = vmatpush1.bf16.msra.mxu0 %v1833
    %2581 = vmatprep.subr.bf16.mxu0 %v1838
    %2582 = vmatpush1.bf16.msra.mxu0 %v1837
    %2583 = vmatprep.mubr.bf16.mxu0 %v278
    %2584 = vmatmul.mubr.bf16.gmra.mrb[0].mxu0 %v277
    %v2585 = vpop.f32.mrb[0].mxu0
    %v2586 = vadd.f32 %v2545, %v2585
    %v2587 = vpop.f32.mrb[0].mxu0
    %v2588 = vadd.f32 %v2547, %v2587
    %v2589 = vpop.f32.mrb[0].mxu0
    %v2590 = vpop.f32.mrb[0].mxu0
    %2591 = vdwg.mxu0
    %2592 = vmatprep.subr.bf16.mxu0 %v1842
    %2593 = vmatpush1.bf16.msra.mxu0 %v1841
    %2594 = vmatprep.subr.bf16.mxu0 %v1846
    %2595 = vmatpush1.bf16.msra.mxu0 %v1845
    %2596 = vmatprep.subr.bf16.mxu0 %v1850
    %2597 = vmatpush1.bf16.msra.mxu0 %v1849
    %2598 = vmatprep.subr.bf16.mxu0 %v1854
    %2599 = vmatpush1.bf16.msra.mxu0 %v1853
    %2600 = vmatprep.subr.bf16.mxu0 %v1858
    %2601 = vmatpush1.bf16.msra.mxu0 %v1857
    %2602 = vmatprep.subr.bf16.mxu0 %v1862
    %2603 = vmatpush1.bf16.msra.mxu0 %v1861
    %2604 = vmatprep.subr.bf16.mxu0 %v1866
    %2605 = vmatpush1.bf16.msra.mxu0 %v1865
    %2606 = vmatprep.subr.bf16.mxu0 %v1870
    %2607 = vmatpush1.bf16.msra.mxu0 %v1869
    %2608 = vmatprep.subr.bf16.mxu0 %v1874
    %2609 = vmatpush1.bf16.msra.mxu0 %v1873
    %2610 = vmatprep.subr.bf16.mxu0 %v1878
    %2611 = vmatpush1.bf16.msra.mxu0 %v1877
    %2612 = vmatprep.subr.bf16.mxu0 %v1882
    %2613 = vmatpush1.bf16.msra.mxu0 %v1881
    %2614 = vmatprep.subr.bf16.mxu0 %v1886
    %2615 = vmatpush1.bf16.msra.mxu0 %v1885
    %2616 = vmatprep.subr.bf16.mxu0 %v1890
    %2617 = vmatpush1.bf16.msra.mxu0 %v1889
    %2618 = vmatprep.subr.bf16.mxu0 %v1894
    %2619 = vmatpush1.bf16.msra.mxu0 %v1893
    %2620 = vmatprep.subr.bf16.mxu0 %v1898
    %2621 = vmatpush1.bf16.msra.mxu0 %v1897
    %2622 = vmatprep.subr.bf16.mxu0 %v1902
    %2623 = vmatpush1.bf16.msra.mxu0 %v1901
    %2624 = vmatprep.mubr.bf16.mxu0 %v280
    %2625 = vmatmul.mubr.bf16.gmra.mrb[0].mxu0 %v279
    %v2626 = vpop.f32.mrb[0].mxu0
    %v2627 = vadd.f32 %v2586, %v2626
    %v2628 = vpop.f32.mrb[0].mxu0
    %v2629 = vadd.f32 %v2588, %v2628
    %v2630 = vpop.f32.mrb[0].mxu0
    %v2631 = vpop.f32.mrb[0].mxu0
    %2632 = vdwg.mxu0
    %v2633 = vld [vmem:[#allocation13] ss:$4 sm:$0xf]
    %2635 = vset.pattern.permute.xlu0 0
    %2636 = vperm.xlu0 %2635, %v212
    %v2637 = vpop.permute.xlu0 %2636
    %v2640 = vlaneseq
    %v2641 = vshrl.u32 %v2640, 7
    %v2642 = vsub.s32 0, %v2641
    %v2643 = vrot.slane %v2633, %v2642
    %v2644 = vlaneseq
    %v2645 = vshrl.u32 %v2644, 7
    %v2646 = vsub.s32 1, %v2645
    %v2647 = vrot.slane %v2633, %v2646
    %v2648 = vlaneseq
    %v2649 = vshrl.u32 %v2648, 7
    %v2650 = vsub.s32 2, %v2649
    %v2651 = vrot.slane %v2633, %v2650
    %v2652 = vlaneseq
    %v2653 = vshrl.u32 %v2652, 7
    %v2654 = vsub.s32 3, %v2653
    %v2655 = vrot.slane %v2633, %v2654
    %v2660 = vmul.f32 %v2637, %v2643
    %v2661 = vmul.f32 %v2637, %v2647
    %v2662 = vmul.f32 %v2637, %v2651
    %v2663 = vmul.f32 %v2637, %v2655
    %v2664 = vadd.f32 %v2422, %v2660
    %v2665 = vadd.f32 %v2424, %v2661
    %v2666 = vadd.f32 %v2627, %v2662
    %v2667 = vadd.f32 %v2629, %v2663
    %s2668 = scalar_lea.vmem [#allocation13], 1
    %v2669 = vld [vmem:[%s2668] ss:$4 sm:$0xf]
    %2670 = vset.pattern.permute.xlu0 1
    %2671 = vperm.xlu0 %2670, %v212
    %v2672 = vpop.permute.xlu0 %2671
    %v2675 = vlaneseq
    %v2676 = vshrl.u32 %v2675, 7
    %v2677 = vsub.s32 0, %v2676
    %v2678 = vrot.slane %v2669, %v2677
    %v2679 = vlaneseq
    %v2680 = vshrl.u32 %v2679, 7
    %v2681 = vsub.s32 1, %v2680
    %v2682 = vrot.slane %v2669, %v2681
    %v2683 = vlaneseq
    %v2684 = vshrl.u32 %v2683, 7
    %v2685 = vsub.s32 2, %v2684
    %v2686 = vrot.slane %v2669, %v2685
    %v2687 = vlaneseq
    %v2688 = vshrl.u32 %v2687, 7
    %v2689 = vsub.s32 3, %v2688
    %v2690 = vrot.slane %v2669, %v2689
    %v2695 = vmul.f32 %v2672, %v2678
    %v2696 = vmul.f32 %v2672, %v2682
    %v2697 = vmul.f32 %v2672, %v2686
    %v2698 = vmul.f32 %v2672, %v2690
    %v2699 = vadd.f32 %v2664, %v2695
    %v2700 = vadd.f32 %v2665, %v2696
    %v2701 = vadd.f32 %v2666, %v2697
    %v2702 = vadd.f32 %v2667, %v2698
    %s2703 = scalar_lea.vmem [#allocation13], 2
    %v2704 = vld [vmem:[%s2703] ss:$4 sm:$0xf]
    %2705 = vset.pattern.permute.xlu0 2
    %2706 = vperm.xlu0 %2705, %v212
    %v2707 = vpop.permute.xlu0 %2706
    %v2710 = vlaneseq
    %v2711 = vshrl.u32 %v2710, 7
    %v2712 = vsub.s32 0, %v2711
    %v2713 = vrot.slane %v2704, %v2712
    %v2714 = vlaneseq
    %v2715 = vshrl.u32 %v2714, 7
    %v2716 = vsub.s32 1, %v2715
    %v2717 = vrot.slane %v2704, %v2716
    %v2718 = vlaneseq
    %v2719 = vshrl.u32 %v2718, 7
    %v2720 = vsub.s32 2, %v2719
    %v2721 = vrot.slane %v2704, %v2720
    %v2722 = vlaneseq
    %v2723 = vshrl.u32 %v2722, 7
    %v2724 = vsub.s32 3, %v2723
    %v2725 = vrot.slane %v2704, %v2724
    %v2730 = vmul.f32 %v2707, %v2713
    %v2731 = vmul.f32 %v2707, %v2717
    %v2732 = vmul.f32 %v2707, %v2721
    %v2733 = vmul.f32 %v2707, %v2725
    %v2734 = vadd.f32 %v2699, %v2730
    %v2735 = vadd.f32 %v2700, %v2731
    %v2736 = vadd.f32 %v2701, %v2732
    %v2737 = vadd.f32 %v2702, %v2733
    %s2738 = scalar_lea.vmem [#allocation13], 3
    %v2739 = vld [vmem:[%s2738] ss:$4 sm:$0xf]
    %2740 = vset.pattern.permute.xlu0 3
    %2741 = vperm.xlu0 %2740, %v212
    %v2742 = vpop.permute.xlu0 %2741
    %v2745 = vlaneseq
    %v2746 = vshrl.u32 %v2745, 7
    %v2747 = vsub.s32 0, %v2746
    %v2748 = vrot.slane %v2739, %v2747
    %v2749 = vlaneseq
    %v2750 = vshrl.u32 %v2749, 7
    %v2751 = vsub.s32 1, %v2750
    %v2752 = vrot.slane %v2739, %v2751
    %v2753 = vlaneseq
    %v2754 = vshrl.u32 %v2753, 7
    %v2755 = vsub.s32 2, %v2754
    %v2756 = vrot.slane %v2739, %v2755
    %v2757 = vlaneseq
    %v2758 = vshrl.u32 %v2757, 7
    %v2759 = vsub.s32 3, %v2758
    %v2760 = vrot.slane %v2739, %v2759
    %v2765 = vmul.f32 %v2742, %v2748
    %v2766 = vmul.f32 %v2742, %v2752
    %v2767 = vmul.f32 %v2742, %v2756
    %v2768 = vmul.f32 %v2742, %v2760
    %v2769 = vadd.f32 %v2734, %v2765
    %v2770 = vadd.f32 %v2735, %v2766
    %v2771 = vadd.f32 %v2736, %v2767
    %v2772 = vadd.f32 %v2737, %v2768
    %v2773 = vld [vmem:[#allocation16] ss:$4 sm:$0xf]
    %s2774 = scalar_lea.vmem [#allocation16], 1
    %v2775 = vld [vmem:[%s2774] ss:$4 sm:$0xf]
    %s2776 = scalar_lea.vmem [#allocation16], 2
    %v2777 = vld [vmem:[%s2776] ss:$4 sm:$0xf]
    %s2778 = scalar_lea.vmem [#allocation16], 3
    %v2779 = vld [vmem:[%s2778] ss:$4 sm:$0xf]
    %v2780 = vadd.f32 %v2779, 1e-05
    %v2781 = vrsqrt.pop %v2780
    %v2782 = vmul.f32 %v2773, %v2781
    %v2784 = vlaneseq
    %v2785 = vshrl.u32 %v2784, 7
    %v2786 = vsub.s32 0, %v2785
    %v2787 = vrot.slane %v2782, %v2786
    %v2788 = vlaneseq
    %v2789 = vshrl.u32 %v2788, 7
    %v2790 = vsub.s32 1, %v2789
    %v2791 = vrot.slane %v2782, %v2790
    %v2792 = vlaneseq
    %v2793 = vshrl.u32 %v2792, 7
    %v2794 = vsub.s32 2, %v2793
    %v2795 = vrot.slane %v2782, %v2794
    %v2796 = vlaneseq
    %v2797 = vshrl.u32 %v2796, 7
    %v2798 = vsub.s32 3, %v2797
    %v2799 = vrot.slane %v2782, %v2798
    %v2804 = vmul.f32 %v2769, %v2787
    %v2805 = vmul.f32 %v2770, %v2791
    %v2806 = vmul.f32 %v2771, %v2795
    %v2807 = vmul.f32 %v2772, %v2799
    %v2808 = vmul.f32 %v2777, %v2782
    %v2809 = vsub.f32 %v2775, %v2808
    %v2811 = vlaneseq
    %v2812 = vshrl.u32 %v2811, 7
    %v2813 = vsub.s32 0, %v2812
    %v2814 = vrot.slane %v2809, %v2813
    %v2815 = vlaneseq
    %v2816 = vshrl.u32 %v2815, 7
    %v2817 = vsub.s32 1, %v2816
    %v2818 = vrot.slane %v2809, %v2817
    %v2819 = vlaneseq
    %v2820 = vshrl.u32 %v2819, 7
    %v2821 = vsub.s32 2, %v2820
    %v2822 = vrot.slane %v2809, %v2821
    %v2823 = vlaneseq
    %v2824 = vshrl.u32 %v2823, 7
    %v2825 = vsub.s32 3, %v2824
    %v2826 = vrot.slane %v2809, %v2825
    %v2831 = vadd.f32 %v2804, %v2814
    %v2832 = vadd.f32 %v2805, %v2818
    %v2833 = vadd.f32 %v2806, %v2822
    %v2834 = vadd.f32 %v2807, %v2826
    %v2835 = vsub.f32 0.0, %v2831
    %v2836 = vsub.f32 0.0, %v2832
    %v2837 = vsub.f32 0.0, %v2833
    %v2838 = vsub.f32 0.0, %v2834
    %v2839 = vmul.f32 %v2835, 1.442695
    %v2840 = vpow.pop %v2839
    %v2841 = vmul.f32 %v2836, 1.442695
    %v2842 = vpow.pop %v2841
    %v2843 = vmul.f32 %v2837, 1.442695
    %v2844 = vpow.pop %v2843
    %v2845 = vmul.f32 %v2838, 1.442695
    %v2846 = vpow.pop %v2845
    %v2847 = vadd.f32 %v2840, 1.0
    %v2848 = vadd.f32 %v2842, 1.0
    %v2849 = vadd.f32 %v2844, 1.0
    %v2850 = vadd.f32 %v2846, 1.0
    %v2851 = vrcp.pop %v2847
    %v2852 = vrcp.pop %v2848
    %v2853 = vrcp.pop %v2849
    %v2854 = vrcp.pop %v2850
    %v2855 = vmul.f32 %v2831, %v2851
    %v2856 = vmul.f32 %v2832, %v2852
    %v2857 = vmul.f32 %v2833, %v2853
    %v2858 = vmul.f32 %v2834, %v2854
    %v2859 = vpack.c.bf16 %v2855, %v2855
    %v2860 = vpack.c.bf16 %v2856, %v2856
    %v2861 = vpack.c.bf16 %v2857, %v2857
    %v2862 = vpack.c.bf16 %v2858, %v2858
    %v2863 = vld [vmem:[%s9] sm:$0xf]
    %v2864 = vld [vmem:[%s9 + $0x4] sm:$0xf]
    %v2865 = vld [vmem:[%s9 + $0x8] sm:$0xf]
    %v2866 = vld [vmem:[%s9 + $0xc] sm:$0xf]
    %v2867 = vld [vmem:[%s9 + $0x10] sm:$0xf]
    %v2868 = vld [vmem:[%s9 + $0x14] sm:$0xf]
    %v2869 = vld [vmem:[%s9 + $0x18] sm:$0xf]
    %v2870 = vld [vmem:[%s9 + $0x1c] sm:$0xf]
    %v2871 = vld [vmem:[%s9 + $0x20] sm:$0xf]
    %v2872 = vld [vmem:[%s9 + $0x24] sm:$0xf]
    %v2873 = vld [vmem:[%s9 + $0x28] sm:$0xf]
    %v2874 = vld [vmem:[%s9 + $0x2c] sm:$0xf]
    %v2875 = vld [vmem:[%s9 + $0x30] sm:$0xf]
    %v2876 = vld [vmem:[%s9 + $0x34] sm:$0xf]
    %v2877 = vld [vmem:[%s9 + $0x38] sm:$0xf]
    %v2878 = vld [vmem:[%s9 + $0x3c] sm:$0xf]
    %v2879 = vld [vmem:[%s9 + $0x40] sm:$0xf]
    %v2880 = vld [vmem:[%s9 + $0x44] sm:$0xf]
    %v2881 = vld [vmem:[%s9 + $0x48] sm:$0xf]
    %v2882 = vld [vmem:[%s9 + $0x4c] sm:$0xf]
    %v2883 = vld [vmem:[%s9 + $0x50] sm:$0xf]
    %v2884 = vld [vmem:[%s9 + $0x54] sm:$0xf]
    %v2885 = vld [vmem:[%s9 + $0x58] sm:$0xf]
    %v2886 = vld [vmem:[%s9 + $0x5c] sm:$0xf]
    %v2887 = vld [vmem:[%s9 + $0x60] sm:$0xf]
    %v2888 = vld [vmem:[%s9 + $0x64] sm:$0xf]
    %v2889 = vld [vmem:[%s9 + $0x68] sm:$0xf]
    %v2890 = vld [vmem:[%s9 + $0x6c] sm:$0xf]
    %v2891 = vld [vmem:[%s9 + $0x70] sm:$0xf]
    %v2892 = vld [vmem:[%s9 + $0x74] sm:$0xf]
    %v2893 = vld [vmem:[%s9 + $0x78] sm:$0xf]
    %v2894 = vld [vmem:[%s9 + $0x7c] sm:$0xf]
    %v2895 = vld [vmem:[%s9 + $0x80] sm:$0xf]
    %v2896 = vld [vmem:[%s9 + $0x84] sm:$0xf]
    %v2897 = vld [vmem:[%s9 + $0x88] sm:$0xf]
    %v2898 = vld [vmem:[%s9 + $0x8c] sm:$0xf]
    %v2899 = vld [vmem:[%s9 + $0x90] sm:$0xf]
    %v2900 = vld [vmem:[%s9 + $0x94] sm:$0xf]
    %v2901 = vld [vmem:[%s9 + $0x98] sm:$0xf]
    %v2902 = vld [vmem:[%s9 + $0x9c] sm:$0xf]
    %v2903 = vld [vmem:[%s9 + $0xa0] sm:$0xf]
    %v2904 = vld [vmem:[%s9 + $0xa4] sm:$0xf]
    %v2905 = vld [vmem:[%s9 + $0xa8] sm:$0xf]
    %v2906 = vld [vmem:[%s9 + $0xac] sm:$0xf]
    %v2907 = vld [vmem:[%s9 + $0xb0] sm:$0xf]
    %v2908 = vld [vmem:[%s9 + $0xb4] sm:$0xf]
    %v2909 = vld [vmem:[%s9 + $0xb8] sm:$0xf]
    %v2910 = vld [vmem:[%s9 + $0xbc] sm:$0xf]
    %v2911 = vld [vmem:[%s9 + $0xc0] sm:$0xf]
    %v2912 = vld [vmem:[%s9 + $0xc4] sm:$0xf]
    %v2913 = vld [vmem:[%s9 + $0xc8] sm:$0xf]
    %v2914 = vld [vmem:[%s9 + $0xcc] sm:$0xf]
    %v2915 = vld [vmem:[%s9 + $0xd0] sm:$0xf]
    %v2916 = vld [vmem:[%s9 + $0xd4] sm:$0xf]
    %v2917 = vld [vmem:[%s9 + $0xd8] sm:$0xf]
    %v2918 = vld [vmem:[%s9 + $0xdc] sm:$0xf]
    %v2919 = vld [vmem:[%s9 + $0xe0] sm:$0xf]
    %v2920 = vld [vmem:[%s9 + $0xe4] sm:$0xf]
    %v2921 = vld [vmem:[%s9 + $0xe8] sm:$0xf]
    %v2922 = vld [vmem:[%s9 + $0xec] sm:$0xf]
    %v2923 = vld [vmem:[%s9 + $0xf0] sm:$0xf]
    %v2924 = vld [vmem:[%s9 + $0xf4] sm:$0xf]
    %v2925 = vld [vmem:[%s9 + $0xf8] sm:$0xf]
    %v2926 = vld [vmem:[%s9 + $0xfc] sm:$0xf]
    %v2927 = vld [vmem:[#allocation17] sm:$0x1]
    %v2929 = vlaneseq
    %v2930 = vshrl.u32 %v2929, 7
    %v2931 = vsub.s32 0, %v2930
    %v2932 = vrot.slane %v2927, %v2931
    %v2998 = vunpack.c.l.b16 %v2863
    %v2999 = vunpack.c.l.b16 %v2864
    %v3000 = vunpack.c.l.b16 %v2865
    %v3001 = vunpack.c.l.b16 %v2866
    %v3002 = vunpack.c.l.b16 %v2867
    %v3003 = vunpack.c.l.b16 %v2868
    %v3004 = vunpack.c.l.b16 %v2869
    %v3005 = vunpack.c.l.b16 %v2870
    %v3006 = vunpack.c.l.b16 %v2871
    %v3007 = vunpack.c.l.b16 %v2872
    %v3008 = vunpack.c.l.b16 %v2873
    %v3009 = vunpack.c.l.b16 %v2874
    %v3010 = vunpack.c.l.b16 %v2875
    %v3011 = vunpack.c.l.b16 %v2876
    %v3012 = vunpack.c.l.b16 %v2877
    %v3013 = vunpack.c.l.b16 %v2878
    %v3014 = vunpack.c.l.b16 %v2879
    %v3015 = vunpack.c.l.b16 %v2880
    %v3016 = vunpack.c.l.b16 %v2881
    %v3017 = vunpack.c.l.b16 %v2882
    %v3018 = vunpack.c.l.b16 %v2883
    %v3019 = vunpack.c.l.b16 %v2884
    %v3020 = vunpack.c.l.b16 %v2885
    %v3021 = vunpack.c.l.b16 %v2886
    %v3022 = vunpack.c.l.b16 %v2887
    %v3023 = vunpack.c.l.b16 %v2888
    %v3024 = vunpack.c.l.b16 %v2889
    %v3025 = vunpack.c.l.b16 %v2890
    %v3026 = vunpack.c.l.b16 %v2891
    %v3027 = vunpack.c.l.b16 %v2892
    %v3028 = vunpack.c.l.b16 %v2893
    %v3029 = vunpack.c.l.b16 %v2894
    %v3030 = vunpack.c.l.b16 %v2895
    %v3031 = vunpack.c.l.b16 %v2896
    %v3032 = vunpack.c.l.b16 %v2897
    %v3033 = vunpack.c.l.b16 %v2898
    %v3034 = vunpack.c.l.b16 %v2899
    %v3035 = vunpack.c.l.b16 %v2900
    %v3036 = vunpack.c.l.b16 %v2901
    %v3037 = vunpack.c.l.b16 %v2902
    %v3038 = vunpack.c.l.b16 %v2903
    %v3039 = vunpack.c.l.b16 %v2904
    %v3040 = vunpack.c.l.b16 %v2905
    %v3041 = vunpack.c.l.b16 %v2906
    %v3042 = vunpack.c.l.b16 %v2907
    %v3043 = vunpack.c.l.b16 %v2908
    %v3044 = vunpack.c.l.b16 %v2909
    %v3045 = vunpack.c.l.b16 %v2910
    %v3046 = vunpack.c.l.b16 %v2911
    %v3047 = vunpack.c.l.b16 %v2912
    %v3048 = vunpack.c.l.b16 %v2913
    %v3049 = vunpack.c.l.b16 %v2914
    %v3050 = vunpack.c.l.b16 %v2915
    %v3051 = vunpack.c.l.b16 %v2916
    %v3052 = vunpack.c.l.b16 %v2917
    %v3053 = vunpack.c.l.b16 %v2918
    %v3054 = vunpack.c.l.b16 %v2919
    %v3055 = vunpack.c.l.b16 %v2920
    %v3056 = vunpack.c.l.b16 %v2921
    %v3057 = vunpack.c.l.b16 %v2922
    %v3058 = vunpack.c.l.b16 %v2923
    %v3059 = vunpack.c.l.b16 %v2924
    %v3060 = vunpack.c.l.b16 %v2925
    %v3061 = vunpack.c.l.b16 %v2926
    %v3062 = vpack.c.b16 %v2999, %v2998
    %v3063 = vpack.c.b16 %v3001, %v3000
    %v3064 = vpack.c.b16 %v3003, %v3002
    %v3065 = vpack.c.b16 %v3005, %v3004
    %v3066 = vpack.c.b16 %v3007, %v3006
    %v3067 = vpack.c.b16 %v3009, %v3008
    %v3068 = vpack.c.b16 %v3011, %v3010
    %v3069 = vpack.c.b16 %v3013, %v3012
    %v3070 = vpack.c.b16 %v3015, %v3014
    %v3071 = vpack.c.b16 %v3017, %v3016
    %v3072 = vpack.c.b16 %v3019, %v3018
    %v3073 = vpack.c.b16 %v3021, %v3020
    %v3074 = vpack.c.b16 %v3023, %v3022
    %v3075 = vpack.c.b16 %v3025, %v3024
    %v3076 = vpack.c.b16 %v3027, %v3026
    %v3077 = vpack.c.b16 %v3029, %v3028
    %v3078 = vpack.c.b16 %v3031, %v3030
    %v3079 = vpack.c.b16 %v3033, %v3032
    %v3080 = vpack.c.b16 %v3035, %v3034
    %v3081 = vpack.c.b16 %v3037, %v3036
    %v3082 = vpack.c.b16 %v3039, %v3038
    %v3083 = vpack.c.b16 %v3041, %v3040
    %v3084 = vpack.c.b16 %v3043, %v3042
    %v3085 = vpack.c.b16 %v3045, %v3044
    %v3086 = vpack.c.b16 %v3047, %v3046
    %v3087 = vpack.c.b16 %v3049, %v3048
    %v3088 = vpack.c.b16 %v3051, %v3050
    %v3089 = vpack.c.b16 %v3053, %v3052
    %v3090 = vpack.c.b16 %v3055, %v3054
    %v3091 = vpack.c.b16 %v3057, %v3056
    %v3092 = vpack.c.b16 %v3059, %v3058
    %v3093 = vpack.c.b16 %v3061, %v3060
    %3126 = vmatprep.subr.bf16.mxu0 0
    %3127 = vmatpush1.bf16.msra.mxu0 %v3062
    %3128 = vmatprep.subr.bf16.mxu0 0
    %3129 = vmatpush1.bf16.msra.mxu0 %v3063
    %3130 = vmatprep.subr.bf16.mxu0 0
    %3131 = vmatpush1.bf16.msra.mxu0 %v3064
    %3132 = vmatprep.subr.bf16.mxu0 0
    %3133 = vmatpush1.bf16.msra.mxu0 %v3065
    %3134 = vmatprep.subr.bf16.mxu0 0
    %3135 = vmatpush1.bf16.msra.mxu0 %v3066
    %3136 = vmatprep.subr.bf16.mxu0 0
    %3137 = vmatpush1.bf16.msra.mxu0 %v3067
    %3138 = vmatprep.subr.bf16.mxu0 0
    %3139 = vmatpush1.bf16.msra.mxu0 %v3068
    %3140 = vmatprep.subr.bf16.mxu0 0
    %3141 = vmatpush1.bf16.msra.mxu0 %v3069
    %3142 = vmatprep.subr.bf16.mxu0 0
    %3143 = vmatpush1.bf16.msra.mxu0 %v3070
    %3144 = vmatprep.subr.bf16.mxu0 0
    %3145 = vmatpush1.bf16.msra.mxu0 %v3071
    %3146 = vmatprep.subr.bf16.mxu0 0
    %3147 = vmatpush1.bf16.msra.mxu0 %v3072
    %3148 = vmatprep.subr.bf16.mxu0 0
    %3149 = vmatpush1.bf16.msra.mxu0 %v3073
    %3150 = vmatprep.subr.bf16.mxu0 0
    %3151 = vmatpush1.bf16.msra.mxu0 %v3074
    %3152 = vmatprep.subr.bf16.mxu0 0
    %3153 = vmatpush1.bf16.msra.mxu0 %v3075
    %3154 = vmatprep.subr.bf16.mxu0 0
    %3155 = vmatpush1.bf16.msra.mxu0 %v3076
    %3156 = vmatprep.subr.bf16.mxu0 0
    %3157 = vmatpush1.bf16.msra.mxu0 %v3077
    %3158 = vmatprep.mubr.bf16.mxu0 %v2860
    %3159 = vmatmul.mubr.bf16.gmra.mrb[0].mxu0 %v2859
    %v3160 = vpop.f32.mrb[0].mxu0
    %v3161 = vadd.f32 %v2932, %v3160
    %v3162 = vpop.f32.mrb[0].mxu0
    %v3163 = vpop.f32.mrb[0].mxu0
    %v3164 = vpop.f32.mrb[0].mxu0
    %3165 = vdwg.mxu0
    %3166 = vmatprep.subr.bf16.mxu0 0
    %3167 = vmatpush1.bf16.msra.mxu0 %v3078
    %3168 = vmatprep.subr.bf16.mxu0 0
    %3169 = vmatpush1.bf16.msra.mxu0 %v3079
    %3170 = vmatprep.subr.bf16.mxu0 0
    %3171 = vmatpush1.bf16.msra.mxu0 %v3080
    %3172 = vmatprep.subr.bf16.mxu0 0
    %3173 = vmatpush1.bf16.msra.mxu0 %v3081
    %3174 = vmatprep.subr.bf16.mxu0 0
    %3175 = vmatpush1.bf16.msra.mxu0 %v3082
    %3176 = vmatprep.subr.bf16.mxu0 0
    %3177 = vmatpush1.bf16.msra.mxu0 %v3083
    %3178 = vmatprep.subr.bf16.mxu0 0
    %3179 = vmatpush1.bf16.msra.mxu0 %v3084
    %3180 = vmatprep.subr.bf16.mxu0 0
    %3181 = vmatpush1.bf16.msra.mxu0 %v3085
    %3182 = vmatprep.subr.bf16.mxu0 0
    %3183 = vmatpush1.bf16.msra.mxu0 %v3086
    %3184 = vmatprep.subr.bf16.mxu0 0
    %3185 = vmatpush1.bf16.msra.mxu0 %v3087
    %3186 = vmatprep.subr.bf16.mxu0 0
    %3187 = vmatpush1.bf16.msra.mxu0 %v3088
    %3188 = vmatprep.subr.bf16.mxu0 0
    %3189 = vmatpush1.bf16.msra.mxu0 %v3089
    %3190 = vmatprep.subr.bf16.mxu0 0
    %3191 = vmatpush1.bf16.msra.mxu0 %v3090
    %3192 = vmatprep.subr.bf16.mxu0 0
    %3193 = vmatpush1.bf16.msra.mxu0 %v3091
    %3194 = vmatprep.subr.bf16.mxu0 0
    %3195 = vmatpush1.bf16.msra.mxu0 %v3092
    %3196 = vmatprep.subr.bf16.mxu0 0
    %3197 = vmatpush1.bf16.msra.mxu0 %v3093
    %3198 = vmatprep.mubr.bf16.mxu0 %v2862
    %3199 = vmatmul.mubr.bf16.gmra.mrb[0].mxu0 %v2861
    %v3200 = vpop.f32.mrb[0].mxu0
    %v3201 = vadd.f32 %v3161, %v3200
    %v3202 = vpop.f32.mrb[0].mxu0
    %v3203 = vpop.f32.mrb[0].mxu0
    %v3204 = vpop.f32.mrb[0].mxu0
    %3205 = vdwg.mxu0
    %vm3206 = vcmask 50176
    %3207 = vst.msk [vmem:[#allocation19] sm:$0x3] %vm3206, %v3201
    // Predicated region
    $region86: #{tpu_custom_call.1} parent=1 // pred_check
      _
    $region87: #{tpu_custom_call.1} parent=1 // pred_check_branch
      %3209 = sbr.rel (0) target = $region89
    $region88: #{tpu_custom_call.1} parent=1 // pred_region
      %s3211 = ssub.s32 32, 32
      %3212 = vsyncadd [#allocation4], %s3211
      %s3214 = sshll.u32 [#allocation19], 4
      %s3215 = int_to_ptr.vmem [resolvable:$true] %s3214
      %3217 = dma.vmem_to_hbm [thread:$0]  %s3215, 32, %s11, [#allocation4]
    $region89: #{tpu_custom_call.1} parent=1 // pred_fallthru
      _
    // Predicated region
    $region90: #{tpu_custom_call.1} parent=1 // pred_check
      _
    $region91: #{tpu_custom_call.1} parent=1 // pred_check_branch
      %3219 = sbr.rel (0) target = $region93
    $region92: #{tpu_custom_call.1} parent=1 // pred_region
      %3220 = dma.done [#allocation4], 32
    $region93: #{tpu_custom_call.1} parent=1 // pred_fallthru
      _
    %3221 = vsyncpa [#allocation3], 1
    %3222 = vsyncpa [#allocation6], 1
    %3223 = vsyncpa [#allocation9], 1
    %3224 = vsyncpa [#allocation12], 1
    %3225 = vsyncpa [#allocation15], 1
    %3226 = vsyncpa [#allocation18], 1
    %3227 = vsyncpa [#allocation4], 1

</llo_original>
